<compile_context>
chip_gen: v7x
topology: tpu7x:2x2x1
jax: 0.10.0
libtpu: 0.0.40
codegen_flags: <defaults>
</compile_context>

<pallas_src>
import math
import functools

import jax
import jax.numpy as jnp
from jax.experimental import pallas as pl
from jax.experimental.pallas import tpu as pltpu

EPS = 1e-5
LEAKY_SLOPE = 0.01  # PyTorch F.leaky_relu default


def _layer_norm(x, gamma, beta):
    # PyTorch LayerNorm: biased variance, eps inside rsqrt.  Two-pass form.
    mu = jnp.mean(x, axis=-1, keepdims=True)
    d = x - mu
    var = jnp.mean(d * d, axis=-1, keepdims=True)
    return d * jax.lax.rsqrt(var + EPS) * gamma + beta


def mhsa_block_kernel(num_heads,
                      x_ref,      # (S, E)  f32   activations for batch b
                      wqkv_ref,   # (E, 3E) bf16  fused QKV weights (pre-T, Q pre-scaled)
                      wo_ref,     # (E, E)  bf16  out-projection (pre-T)
                      wf_ref,     # (E, E)  bf16  fc (pre-T)
                      vec_ref,    # (8, 3E) f32   packed bias / LayerNorm vectors
                      o_ref):     # (S, E)
    S, E = x_ref.shape
    H = num_heads
    dh = E // H

    x = x_ref[...]                                   # f32, kept for residuals / LN
    x16 = x.astype(jnp.bfloat16)

    vec = vec_ref[...]
    b_qkv = vec[0:1, :]                              # (1, 3E)
    bo = vec[1:2, :E]
    g1 = vec[2:3, :E]
    b1 = vec[3:4, :E]
    bf_ = vec[4:5, :E]
    g2 = vec[5:6, :E]
    b2 = vec[6:7, :E]

    # ---- fused QKV in-projection: one wide bf16 MXU matmul, f32 accumulation
    # (wqkv already carries the 1/sqrt(dh) scale in its Q columns).
    qkv = jnp.dot(x16, wqkv_ref[...],
                  preferred_element_type=jnp.float32) + b_qkv   # (S, 3E) f32

    # ---- head-batched attention --------------------------------------------
    def split_heads(z):                              # (S, E) -> (H, S, dh)
        return z.reshape(S, H, dh).transpose(1, 0, 2)

    q = split_heads(qkv[:, :E]).astype(jnp.bfloat16)
    k = split_heads(qkv[:, E:2 * E]).astype(jnp.bfloat16)
    v = split_heads(qkv[:, 2 * E:]).astype(jnp.bfloat16)

    s = jnp.einsum('hqd,hkd->hqk', q, k,
                   preferred_element_type=jnp.float32)           # (H, S, S) f32
    s = s - jnp.max(s, axis=-1, keepdims=True)
    p = jnp.exp(s)
    p = p / jnp.sum(p, axis=-1, keepdims=True)       # exact normalization (see header)

    ctx = jnp.einsum('hqk,hkd->hqd', p.astype(jnp.bfloat16), v,
                     preferred_element_type=jnp.float32)         # (H, S, dh) f32

    # Merge heads back to (S, E); single (S,E)@(E,E) out-projection, bias fused.
    ctx2d = ctx.transpose(1, 0, 2).reshape(S, E).astype(jnp.bfloat16)
    attn = bo + jnp.dot(ctx2d, wo_ref[...], preferred_element_type=jnp.float32)

    # ---- residual block 1: x1 = LayerNorm1(attn) + x ----
    x1 = _layer_norm(attn, g1, b1) + x

    # ---- fc + LeakyReLU ----
    h1 = jnp.dot(x1.astype(jnp.bfloat16), wf_ref[...],
                 preferred_element_type=jnp.float32) + bf_
    h1 = jnp.where(h1 >= 0, h1, LEAKY_SLOPE * h1)

    # ---- residual block 2: out = LayerNorm2(h1) + x1 ----
    out = _layer_norm(h1, g2, b2) + x1

    o_ref[...] = out.astype(o_ref.dtype)


def mhsa_block(x, params, num_heads):
    B, S, E = x.shape
    M = B * S
    dh = E // num_heads
    scale = 1.0 / math.sqrt(dh)

    # --- one-time wrapper-side weight prep (XLA, not per grid step) ----------
    # Pre-transpose, fold the 1/sqrt(dh) attention scale into the Q columns,
    # and cast the MXU operands to bf16 (f32 accumulation inside the kernel).
    w_qkv = jnp.concatenate(
        [params["wq"] * scale, params["wk"], params["wv"]],
        axis=0).T.astype(jnp.bfloat16)                          # (E, 3E)
    wo_t = params["wo"].T.astype(jnp.bfloat16)                  # (E, E)
    wf_t = params["wf"].T.astype(jnp.bfloat16)                  # (E, E)

    # Pack the per-channel vectors into a single (8, 3E) f32 slab -> one DMA.
    b_qkv = jnp.concatenate([params["bq"] * scale, params["bk"], params["bv"]])
    pad = lambda v: jnp.pad(v, (0, 2 * E))
    vec_pack = jnp.stack([
        b_qkv,
        pad(params["bo"]), pad(params["g1"]), pad(params["b1"]),
        pad(params["bf"]), pad(params["g2"]), pad(params["b2"]),
        jnp.zeros((3 * E,), jnp.float32),
    ]).astype(jnp.float32)                                      # (8, 3E)

    x2d = x.reshape(M, E)                                       # contiguous slab

    # Advisory cost estimate (bf16 weight bytes, f32 activations).
    flops = int(2 * M * E * 3 * E                    # fused QKV projection
                + 4 * B * num_heads * S * S * dh     # scores + context matmuls
                + 2 * M * E * E                      # out-projection
                + 2 * M * E * E                      # fc
                + 12 * M * E)                        # LN / residual / LeakyReLU
    transcendentals = int(B * num_heads * S * S + 2 * M)
    bytes_accessed = int(4 * (x2d.size + vec_pack.size + M * E)
                         + 2 * (w_qkv.size + wo_t.size + wf_t.size))

    out2d = pl.pallas_call(
        functools.partial(mhsa_block_kernel, num_heads),
        out_shape=jax.ShapeDtypeStruct((M, E), x.dtype),
        grid_spec=pltpu.PrefetchScalarGridSpec(
            num_scalar_prefetch=0,
            grid=(B,),   # one independent attention problem per batch element
            in_specs=[
                pl.BlockSpec((S, E), lambda b: (b, 0)),         # x rows of batch b
                pl.BlockSpec((E, 3 * E), lambda b: (0, 0)),     # resident weights
                pl.BlockSpec((E, E), lambda b: (0, 0)),
                pl.BlockSpec((E, E), lambda b: (0, 0)),
                pl.BlockSpec((8, 3 * E), lambda b: (0, 0)),
            ],
            out_specs=pl.BlockSpec((S, E), lambda b: (b, 0)),
        ),
        compiler_params=pltpu.CompilerParams(
            dimension_semantics=("parallel",)),   # v7x: split batches across TCs
        cost_estimate=pl.CostEstimate(flops=flops,
                                      transcendentals=transcendentals,
                                      bytes_accessed=bytes_accessed),
    )(x2d, w_qkv, wo_t, wf_t, vec_pack)
    return out2d.reshape(B, S, E)


def reference(x, p, num_heads, matmul_dtype=jnp.float32):
    """Pure-JAX forward of the PyTorch module.

    matmul_dtype=float32  : faithful full-precision reference.
    matmul_dtype=bfloat16 : every matmul takes bf16 operands with f32
                            accumulation (softmax / LayerNorm stay f32),
                            mirroring the kernel's MXU precision -> tight check.
    """
    B, S, E = x.shape
    dh = E // num_heads
    scale = 1.0 / math.sqrt(dh)
    c = lambda a: a.astype(matmul_dtype)

    def proj(z, w, b):          # z @ w.T + b, f32 accumulation
        return jnp.einsum("bse,fe->bsf", c(z), c(w),
                          preferred_element_type=jnp.float32) + b

    q = proj(x, p["wq"] * scale, p["bq"] * scale)   # scale folded as in kernel
    k = proj(x, p["wk"], p["bk"])
    v = proj(x, p["wv"], p["bv"])

    qh = q.reshape(B, S, num_heads, dh).transpose(0, 2, 1, 3)
    kh = k.reshape(B, S, num_heads, dh).transpose(0, 2, 1, 3)
    vh = v.reshape(B, S, num_heads, dh).transpose(0, 2, 1, 3)

    s = jnp.einsum("bhsd,bhtd->bhst", c(qh), c(kh),
                   preferred_element_type=jnp.float32)
    s = s - jnp.max(s, axis=-1, keepdims=True)
    pa = jnp.exp(s)
    pa = pa / jnp.sum(pa, axis=-1, keepdims=True)

    ctx = jnp.einsum("bhst,bhtd->bhsd", c(pa), c(vh),
                     preferred_element_type=jnp.float32)
    ctx = ctx.transpose(0, 2, 1, 3).reshape(B, S, E)
    o = proj(ctx, p["wo"], p["bo"])

    def ln(z, g, b):
        mu = jnp.mean(z, -1, keepdims=True)
        var = jnp.mean((z - mu) ** 2, -1, keepdims=True)
        return (z - mu) / jnp.sqrt(var + EPS) * g + b

    x1 = ln(o, p["g1"], p["b1"]) + x
    h1 = proj(x1, p["wf"], p["bf"])
    h1 = jnp.where(h1 >= 0, h1, LEAKY_SLOPE * h1)
    return ln(h1, p["g2"], p["b2"]) + x1


if __name__ == "__main__":
    B, S, E, H = 2, 8, 32, 4
    key = jax.random.PRNGKey(0)
    keys = jax.random.split(key, 8)

    # Deterministic synthetic parameters (shapes follow the PyTorch module).
    params = {
        "wq": 0.05 * jax.random.normal(keys[0], (E, E), jnp.float32),
        "wk": 0.05 * jax.random.normal(keys[1], (E, E), jnp.float32),
        "wv": 0.05 * jax.random.normal(keys[2], (E, E), jnp.float32),
        "bq": jnp.zeros((E,), jnp.float32),
        "bk": jnp.zeros((E,), jnp.float32),
        "bv": jnp.zeros((E,), jnp.float32),
        "wo": 0.05 * jax.random.normal(keys[3], (E, E), jnp.float32),
        "bo": 0.01 * jnp.ones((E,), jnp.float32),
        "g1": jnp.ones((E,), jnp.float32),
        "b1": jnp.zeros((E,), jnp.float32),
        "wf": 0.05 * jax.random.normal(keys[4], (E, E), jnp.float32),
        "bf": 0.01 * jnp.ones((E,), jnp.float32),
        "g2": jnp.ones((E,), jnp.float32),
        "b2": jnp.zeros((E,), jnp.float32),
    }

    x = jax.random.normal(keys[5], (B, S, E), jnp.float32)

    out = jax.block_until_ready(mhsa_block(x, params, H))
    assert out.shape == (B, S, E)

    # Tight check: reference with the SAME MXU operand precision as the kernel
    # (bf16 operands, f32 accumulation).  Isolates kernel bugs from the
    # intentional bf16 quantization of the matmul operands.
    ref_bf16 = reference(x, params, H, matmul_dtype=jnp.bfloat16)
    err_bf16 = float(jnp.max(jnp.abs(out - ref_bf16)))
    assert jnp.allclose(out, ref_bf16, atol=5e-3, rtol=5e-3), err_bf16

    # Loose check: pure-f32 reference.  LayerNorm1 divides by the (small)
    # per-row std of the attention output, amplifying the bf16 operand
    # rounding ~35x, so a few 1e-2 of absolute difference is expected here.
    ref_f32 = reference(x, params, H, matmul_dtype=jnp.float32)
    err_f32 = float(jnp.max(jnp.abs(out - ref_f32)))
    assert jnp.allclose(out, ref_f32, atol=5e-2, rtol=5e-2), err_f32

    print("KERNEL_OK")
</pallas_src>

<mosaic_0001>
module attributes {stable_mosaic.version = 11 : i64} {
  func.func @mhsa_block_kernel(%arg0: i32, %arg1: memref<8x32xf32, #tpu.memory_space<vmem>>, %arg2: memref<32x96xbf16, #tpu.memory_space<vmem>>, %arg3: memref<32x32xbf16, #tpu.memory_space<vmem>>, %arg4: memref<32x32xbf16, #tpu.memory_space<vmem>>, %arg5: memref<8x96xf32, #tpu.memory_space<vmem>>, %arg6: memref<8x32xf32, #tpu.memory_space<vmem>>) attributes {dimension_semantics = [#tpu.dimension_semantics<parallel>], iteration_bounds = array<i64: 2>, scalar_prefetch = 0 : i64, scratch_operands = 0 : i64, tpu.core_type = #tpu.core_type<tc>, window_params = [{transform_indices = @transform_0, window_bounds = array<i64: 8, 32>}, {pipeline_mode = #tpu.pipeline_mode<synchronous>, transform_indices = @transform_1, window_bounds = array<i64: 32, 96>}, {pipeline_mode = #tpu.pipeline_mode<synchronous>, transform_indices = @transform_2, window_bounds = array<i64: 32, 32>}, {pipeline_mode = #tpu.pipeline_mode<synchronous>, transform_indices = @transform_3, window_bounds = array<i64: 32, 32>}, {pipeline_mode = #tpu.pipeline_mode<synchronous>, transform_indices = @transform_4, window_bounds = array<i64: 8, 96>}, {transform_indices = @transform_5, window_bounds = array<i64: 8, 32>}]} {
    %c0 = arith.constant 0 : index
    %c0_0 = arith.constant 0 : index
    %0 = vector.load %arg1[%c0, %c0_0] : memref<8x32xf32, #tpu.memory_space<vmem>>, vector<8x32xf32>
    %1 = arith.truncf %0 : vector<8x32xf32> to vector<8x32xbf16>
    %c0_1 = arith.constant 0 : index
    %c0_2 = arith.constant 0 : index
    %2 = vector.load %arg5[%c0_1, %c0_2] : memref<8x96xf32, #tpu.memory_space<vmem>>, vector<8x96xf32>
    %3 = vector.extract_strided_slice %2 {offsets = [0, 0], sizes = [1, 96], strides = [1, 1]} : vector<8x96xf32> to vector<1x96xf32>
    %4 = vector.extract_strided_slice %2 {offsets = [1, 0], sizes = [1, 32], strides = [1, 1]} : vector<8x96xf32> to vector<1x32xf32>
    %5 = vector.extract_strided_slice %2 {offsets = [2, 0], sizes = [1, 32], strides = [1, 1]} : vector<8x96xf32> to vector<1x32xf32>
    %6 = vector.extract_strided_slice %2 {offsets = [3, 0], sizes = [1, 32], strides = [1, 1]} : vector<8x96xf32> to vector<1x32xf32>
    %7 = vector.extract_strided_slice %2 {offsets = [4, 0], sizes = [1, 32], strides = [1, 1]} : vector<8x96xf32> to vector<1x32xf32>
    %8 = vector.extract_strided_slice %2 {offsets = [5, 0], sizes = [1, 32], strides = [1, 1]} : vector<8x96xf32> to vector<1x32xf32>
    %9 = vector.extract_strided_slice %2 {offsets = [6, 0], sizes = [1, 32], strides = [1, 1]} : vector<8x96xf32> to vector<1x32xf32>
    %c0_3 = arith.constant 0 : index
    %c0_4 = arith.constant 0 : index
    %10 = vector.load %arg2[%c0_3, %c0_4] : memref<32x96xbf16, #tpu.memory_space<vmem>>, vector<32x96xbf16>
    %cst = arith.constant dense<0.000000e+00> : vector<8x96xf32>
    %11 = tpu.matmul %1, %10, %cst {dimension_numbers = #tpu.dot_dimension_numbers<[1], [0], [0], [1], [0, 0, 1, 1], [], []>} : vector<8x32xbf16>, vector<32x96xbf16>, vector<8x96xf32> -> vector<8x96xf32>
    %12 = vector.broadcast %3 : vector<1x96xf32> to vector<8x96xf32>
    %13 = arith.addf %11, %12 : vector<8x96xf32>
    %14 = vector.extract_strided_slice %13 {offsets = [0, 0], sizes = [8, 32], strides = [1, 1]} : vector<8x96xf32> to vector<8x32xf32>
    %15 = vector.shape_cast %14 : vector<8x32xf32> to vector<8x4x8xf32>
    %16 = tpu.transpose %15, [1, 0, 2] : vector<8x4x8xf32> -> vector<4x8x8xf32>
    %17 = arith.truncf %16 : vector<4x8x8xf32> to vector<4x8x8xbf16>
    %18 = vector.extract_strided_slice %13 {offsets = [0, 32], sizes = [8, 32], strides = [1, 1]} : vector<8x96xf32> to vector<8x32xf32>
    %19 = vector.shape_cast %18 : vector<8x32xf32> to vector<8x4x8xf32>
    %20 = tpu.transpose %19, [1, 0, 2] : vector<8x4x8xf32> -> vector<4x8x8xf32>
    %21 = arith.truncf %20 : vector<4x8x8xf32> to vector<4x8x8xbf16>
    %22 = vector.extract_strided_slice %13 {offsets = [0, 64], sizes = [8, 32], strides = [1, 1]} : vector<8x96xf32> to vector<8x32xf32>
    %23 = vector.shape_cast %22 : vector<8x32xf32> to vector<8x4x8xf32>
    %24 = tpu.transpose %23, [1, 0, 2] : vector<8x4x8xf32> -> vector<4x8x8xf32>
    %25 = arith.truncf %24 : vector<4x8x8xf32> to vector<4x8x8xbf16>
    "tpu.trace_start"() <{level = 10 : i32, message = "hqd,hkd->hqk"}> : () -> ()
    %cst_5 = arith.constant dense<0.000000e+00> : vector<4x8x8xf32>
    %26 = tpu.matmul %17, %21, %cst_5 {dimension_numbers = #tpu.dot_dimension_numbers<[2], [2], [1], [1], [0, 0, 0, 1, 1, 1], [0], [0]>} : vector<4x8x8xbf16>, vector<4x8x8xbf16>, vector<4x8x8xf32> -> vector<4x8x8xf32>
    "tpu.trace_stop"() : () -> ()
    %cst_6 = arith.constant dense<0xFF800000> : vector<4x8xf32>
    %27 = vector.multi_reduction <maximumf>, %26, %cst_6 [2] : vector<4x8x8xf32> to vector<4x8xf32>
    %28 = vector.shape_cast %27 : vector<4x8xf32> to vector<4x8x1xf32>
    %29 = vector.broadcast %28 : vector<4x8x1xf32> to vector<4x8x8xf32>
    %30 = arith.subf %26, %29 : vector<4x8x8xf32>
    %31 = math.exp %30 : vector<4x8x8xf32>
    %cst_7 = arith.constant dense<0.000000e+00> : vector<4x8xf32>
    %32 = vector.multi_reduction <add>, %31, %cst_7 [2] : vector<4x8x8xf32> to vector<4x8xf32>
    %33 = vector.shape_cast %32 : vector<4x8xf32> to vector<4x8x1xf32>
    %34 = vector.broadcast %33 : vector<4x8x1xf32> to vector<4x8x8xf32>
    %35 = arith.divf %31, %34 : vector<4x8x8xf32>
    %36 = arith.truncf %35 : vector<4x8x8xf32> to vector<4x8x8xbf16>
    "tpu.trace_start"() <{level = 10 : i32, message = "hqk,hkd->hqd"}> : () -> ()
    %cst_8 = arith.constant dense<0.000000e+00> : vector<4x8x8xf32>
    %37 = tpu.matmul %36, %25, %cst_8 {dimension_numbers = #tpu.dot_dimension_numbers<[2], [1], [1], [2], [0, 0, 0, 1, 1, 2], [0], [0]>} : vector<4x8x8xbf16>, vector<4x8x8xbf16>, vector<4x8x8xf32> -> vector<4x8x8xf32>
    "tpu.trace_stop"() : () -> ()
    %38 = tpu.transpose %37, [1, 0, 2] : vector<4x8x8xf32> -> vector<8x4x8xf32>
    %39 = vector.shape_cast %38 : vector<8x4x8xf32> to vector<8x32xf32>
    %40 = arith.truncf %39 : vector<8x32xf32> to vector<8x32xbf16>
    %c0_9 = arith.constant 0 : index
    %c0_10 = arith.constant 0 : index
    %41 = vector.load %arg3[%c0_9, %c0_10] : memref<32x32xbf16, #tpu.memory_space<vmem>>, vector<32x32xbf16>
    %cst_11 = arith.constant dense<0.000000e+00> : vector<8x32xf32>
    %42 = tpu.matmul %40, %41, %cst_11 {dimension_numbers = #tpu.dot_dimension_numbers<[1], [0], [0], [1], [0, 0, 1, 1], [], []>} : vector<8x32xbf16>, vector<32x32xbf16>, vector<8x32xf32> -> vector<8x32xf32>
    %43 = vector.broadcast %4 : vector<1x32xf32> to vector<8x32xf32>
    %44 = arith.addf %43, %42 : vector<8x32xf32>
    %cst_12 = arith.constant dense<0.000000e+00> : vector<8xf32>
    %45 = vector.multi_reduction <add>, %44, %cst_12 [1] : vector<8x32xf32> to vector<8xf32>
    %46 = vector.shape_cast %45 : vector<8xf32> to vector<8x1xf32>
    %cst_13 = arith.constant 3.200000e+01 : f32
    %47 = vector.broadcast %cst_13 : f32 to vector<8x1xf32>
    %48 = arith.divf %46, %47 : vector<8x1xf32>
    %49 = vector.broadcast %48 : vector<8x1xf32> to vector<8x32xf32>
    %50 = arith.subf %44, %49 : vector<8x32xf32>
    %51 = arith.mulf %50, %50 : vector<8x32xf32>
    %cst_14 = arith.constant dense<0.000000e+00> : vector<8xf32>
    %52 = vector.multi_reduction <add>, %51, %cst_14 [1] : vector<8x32xf32> to vector<8xf32>
    %53 = vector.shape_cast %52 : vector<8xf32> to vector<8x1xf32>
    %cst_15 = arith.constant 3.200000e+01 : f32
    %54 = vector.broadcast %cst_15 : f32 to vector<8x1xf32>
    %55 = arith.divf %53, %54 : vector<8x1xf32>
    %cst_16 = arith.constant 9.99999974E-6 : f32
    %56 = vector.broadcast %cst_16 : f32 to vector<8x1xf32>
    %57 = arith.addf %55, %56 : vector<8x1xf32>
    %58 = math.rsqrt %57 : vector<8x1xf32>
    %59 = vector.broadcast %58 : vector<8x1xf32> to vector<8x32xf32>
    %60 = arith.mulf %50, %59 : vector<8x32xf32>
    %61 = vector.broadcast %5 : vector<1x32xf32> to vector<8x32xf32>
    %62 = arith.mulf %60, %61 : vector<8x32xf32>
    %63 = vector.broadcast %6 : vector<1x32xf32> to vector<8x32xf32>
    %64 = arith.addf %62, %63 : vector<8x32xf32>
    %65 = arith.addf %64, %0 : vector<8x32xf32>
    %66 = arith.truncf %65 : vector<8x32xf32> to vector<8x32xbf16>
    %c0_17 = arith.constant 0 : index
    %c0_18 = arith.constant 0 : index
    %67 = vector.load %arg4[%c0_17, %c0_18] : memref<32x32xbf16, #tpu.memory_space<vmem>>, vector<32x32xbf16>
    %cst_19 = arith.constant dense<0.000000e+00> : vector<8x32xf32>
    %68 = tpu.matmul %66, %67, %cst_19 {dimension_numbers = #tpu.dot_dimension_numbers<[1], [0], [0], [1], [0, 0, 1, 1], [], []>} : vector<8x32xbf16>, vector<32x32xbf16>, vector<8x32xf32> -> vector<8x32xf32>
    %69 = vector.broadcast %7 : vector<1x32xf32> to vector<8x32xf32>
    %70 = arith.addf %68, %69 : vector<8x32xf32>
    %cst_20 = arith.constant 0.000000e+00 : f32
    %71 = vector.broadcast %cst_20 : f32 to vector<8x32xf32>
    %72 = arith.cmpf oge, %70, %71 : vector<8x32xf32>
    %cst_21 = arith.constant 0.00999999977 : f32
    %73 = vector.broadcast %cst_21 : f32 to vector<8x32xf32>
    %74 = arith.mulf %73, %70 : vector<8x32xf32>
    %75 = arith.select %72, %70, %74 : vector<8x32xi1>, vector<8x32xf32>
    %cst_22 = arith.constant dense<0.000000e+00> : vector<8xf32>
    %76 = vector.multi_reduction <add>, %75, %cst_22 [1] : vector<8x32xf32> to vector<8xf32>
    %77 = vector.shape_cast %76 : vector<8xf32> to vector<8x1xf32>
    %cst_23 = arith.constant 3.200000e+01 : f32
    %78 = vector.broadcast %cst_23 : f32 to vector<8x1xf32>
    %79 = arith.divf %77, %78 : vector<8x1xf32>
    %80 = vector.broadcast %79 : vector<8x1xf32> to vector<8x32xf32>
    %81 = arith.subf %75, %80 : vector<8x32xf32>
    %82 = arith.mulf %81, %81 : vector<8x32xf32>
    %cst_24 = arith.constant dense<0.000000e+00> : vector<8xf32>
    %83 = vector.multi_reduction <add>, %82, %cst_24 [1] : vector<8x32xf32> to vector<8xf32>
    %84 = vector.shape_cast %83 : vector<8xf32> to vector<8x1xf32>
    %cst_25 = arith.constant 3.200000e+01 : f32
    %85 = vector.broadcast %cst_25 : f32 to vector<8x1xf32>
    %86 = arith.divf %84, %85 : vector<8x1xf32>
    %cst_26 = arith.constant 9.99999974E-6 : f32
    %87 = vector.broadcast %cst_26 : f32 to vector<8x1xf32>
    %88 = arith.addf %86, %87 : vector<8x1xf32>
    %89 = math.rsqrt %88 : vector<8x1xf32>
    %90 = vector.broadcast %89 : vector<8x1xf32> to vector<8x32xf32>
    %91 = arith.mulf %81, %90 : vector<8x32xf32>
    %92 = vector.broadcast %8 : vector<1x32xf32> to vector<8x32xf32>
    %93 = arith.mulf %91, %92 : vector<8x32xf32>
    %94 = vector.broadcast %9 : vector<1x32xf32> to vector<8x32xf32>
    %95 = arith.addf %93, %94 : vector<8x32xf32>
    %96 = arith.addf %95, %65 : vector<8x32xf32>
    %c0_27 = arith.constant 0 : index
    %c0_28 = arith.constant 0 : index
    %97 = vector.load %arg6[%c0_27, %c0_28] : memref<8x32xf32, #tpu.memory_space<vmem>>, vector<8x32xf32>
    tpu.vector_store %arg6[%c0_27, %c0_28], %96 {strides = array<i32>} : memref<8x32xf32, #tpu.memory_space<vmem>>, vector<8x32xf32>,
    return
  }
  func.func @transform_0(%arg0: i32) -> (i32, i32) {
    %c0_i32 = arith.constant 0 : i32
    %c0_i32_0 = arith.constant 0 : i32
    return %arg0, %c0_i32 : i32, i32
  }
  func.func @transform_1(%arg0: i32) -> (i32, i32) {
    %c0_i32 = arith.constant 0 : i32
    %c0_i32_0 = arith.constant 0 : i32
    %c0_i32_1 = arith.constant 0 : i32
    return %c0_i32, %c0_i32_0 : i32, i32
  }
  func.func @transform_2(%arg0: i32) -> (i32, i32) {
    %c0_i32 = arith.constant 0 : i32
    %c0_i32_0 = arith.constant 0 : i32
    %c0_i32_1 = arith.constant 0 : i32
    return %c0_i32, %c0_i32_0 : i32, i32
  }
  func.func @transform_3(%arg0: i32) -> (i32, i32) {
    %c0_i32 = arith.constant 0 : i32
    %c0_i32_0 = arith.constant 0 : i32
    %c0_i32_1 = arith.constant 0 : i32
    return %c0_i32, %c0_i32_0 : i32, i32
  }
  func.func @transform_4(%arg0: i32) -> (i32, i32) {
    %c0_i32 = arith.constant 0 : i32
    %c0_i32_0 = arith.constant 0 : i32
    %c0_i32_1 = arith.constant 0 : i32
    return %c0_i32, %c0_i32_0 : i32, i32
  }
  func.func @transform_5(%arg0: i32) -> (i32, i32) {
    %c0_i32 = arith.constant 0 : i32
    %c0_i32_0 = arith.constant 0 : i32
    return %arg0, %c0_i32 : i32, i32
  }
}

</mosaic_0001>

<llo_original>
// kernel: tpu_custom_call.1
$region0: #{tpu_custom_call.1}
  #allocation0 [shape = 'u32[]', space=smem, size = 0x4, offset = 0x4, fixed_abs, tag = 'smem constant byte address 0x4 - core index']
  #allocation1 [shape = 'u32[144,128]{1,0:T(1,128)}', space=vmem, size = 0x12000, scoped, tag = 'internal scratch']
  %s0 = inlined_call_operand.hbm [shape: f32[16,32], index: 0, kind: input, shape index: {}]
  %s1 = inlined_call_operand.hbm [shape: bf16[32,96], index: 1, kind: input, shape index: {}]
  %s2 = inlined_call_operand.hbm [shape: bf16[32,32], index: 2, kind: input, shape index: {}]
  %s3 = inlined_call_operand.hbm [shape: bf16[32,32], index: 3, kind: input, shape index: {}]
  %s4 = inlined_call_operand.vmem [shape: f32[8,96], index: 4, kind: input, shape index: {}]
  %s5 = inlined_call_operand.hbm [shape: f32[16,32], index: 5, kind: output, shape index: {}]
  %s6 = sld [smem:[#allocation0]]
  $region69: #{tpu_custom_call.1} parent=0
    _
  %s8 = ssub.s32 1, %s6
  %s9 = scalar_select 0, %s8, %s6
  $region1: #{tpu_custom_call.1} parent=0
    #allocation2 [shape = 'u8[8192]{0}', space=vmem, size = 0x2000, scoped, tag = 'input window, operand 0']
    #allocation3 [shape = 's32[2]{0}', space=sflag, size = 0x8, scoped, tag = 'scoped memory for tpu_custom_call.1']
    #allocation4 [shape = 's32[2]{0}', space=sflag, size = 0x8, scoped, tag = 'scoped memory for tpu_custom_call.1']
    #allocation5 [shape = 'u8[8192]{0}', space=vmem, size = 0x2000, scoped, tag = 'input window, operand 1, single buffered']
    #allocation6 [shape = 's32[1]{0}', space=sflag, size = 0x4, scoped, tag = 'scoped memory for tpu_custom_call.1']
    #allocation7 [shape = 'u8[8192]{0}', space=vmem, size = 0x2000, scoped, tag = 'input window, operand 2, single buffered']
    #allocation8 [shape = 'u8[8192]{0}', space=vmem, size = 0x2000, scoped, tag = 'input window, operand 3, single buffered']
    #allocation9 [shape = 's32[1]{0}', space=sflag, size = 0x4, scoped, tag = 'scoped memory for tpu_custom_call.1']
    #allocation10 [shape = 'u8[8192]{0}', space=vmem, size = 0x2000, scoped, tag = 'output window, operand 0']
    %10 = vsyncpa [#allocation3], 0
    %s11 = scalar_lea.sflag [#allocation3], 1
    %12 = vsyncpa %s11, 0
    %13 = vsyncpa [#allocation6], 0
    %14 = vsyncpa [#allocation9], 0
    %15 = vsyncpa [#allocation4], 0
    %s16 = scalar_lea.sflag [#allocation4], 1
    %17 = vsyncpa %s16, 0
    loop: start=0, step=1, limit=4
    $region2: #{tpu_custom_call.1} parent=1 // loop_pre_header
      _
    $region3: #{tpu_custom_call.1} parent=1 // loop_header
      %s19 = sphi 0, %s23
      %p20 = scmp.ge.s32.totalorder %s19, 4
      %s29 = sphi 0, %s31
      %s32 = sphi 0, %s29
      %s33 = sphi 0, %s32
      %s49 = sphi 0, %s33
      %s53 = sphi 0, %s53
      %s55 = sphi 0, %s53
      %s56 = sphi 0, %s55
      %s70 = sphi 0, %s56
      %s74 = sphi 0, %s74
      %s76 = sphi 0, %s74
      %s77 = sphi 0, %s76
      %s91 = sphi 0, %s77
      %s95 = sphi 0, %s95
      %s97 = sphi 0, %s95
      %s98 = sphi 0, %s97
      %s112 = sphi 0, %s98
      %s116 = sphi 0, %s116
      %s118 = sphi 0, %s116
      %s119 = sphi 0, %s118
      %s133 = sphi 0, %s119
      %s139 = sphi 0, %s141
      %s142 = sphi 0, %s139
      %s143 = sphi 0, %s142
      %s159 = sphi 0, %s143
    $region4: #{tpu_custom_call.1} parent=1 // loop_header_branch
      %22 = sbr.rel (%p20) target = $region8
    $region5: #{tpu_custom_call.1} parent=1 // loop_body
      %s24 = ssub.s32 %s19, 1
      %s25 = ssub.s32 %s19, 2
      %s26 = sadd.s32 %s19, 1
      %s27 = ssub.s32 %s19, %s26
      %p28 = scmp.eq.s32.totalorder %s27, 0
      %s30 = sadd.s32 %s29, 1
      %s31 = scalar_select %p28, %s29, %s30
      %p34 = pneg %p28
      %p35 = scmp.eq.s32.totalorder %s19, 1
      %p36 = por %p34, %p35
      %p37 = scmp.ne.s32.totalorder %s29, %s32
      %p38 = scmp.eq.s32.totalorder %s19, 0
      %p39 = por %p37, %p38
      %p40 = scmp.ne.s32.totalorder %s29, %s32
      %p41 = scmp.eq.s32.totalorder %s24, 1
      %p42 = por %p40, %p41
      %p43 = scmp.ne.s32.totalorder %s32, %s33
      %p44 = scmp.eq.s32.totalorder %s24, 0
      %p45 = por %p43, %p44
      %p46 = scmp.ne.s32.totalorder %s32, %s33
      %p47 = scmp.eq.s32.totalorder %s25, 1
      %p48 = por %p46, %p47
      %p50 = scmp.ne.s32.totalorder %s33, %s49
      %p51 = scmp.eq.s32.totalorder %s25, 0
      %p52 = por %p50, %p51
      %s54 = sadd.s32 %s53, 1
      %p57 = scmp.eq.s32.totalorder %s19, 1
      %p58 = scmp.ne.s32.totalorder %s53, %s55
      %p59 = scmp.eq.s32.totalorder %s19, 0
      %p60 = por %p58, %p59
      %p61 = scmp.ne.s32.totalorder %s53, %s55
      %p62 = scmp.eq.s32.totalorder %s24, 1
      %p63 = por %p61, %p62
      %p64 = scmp.ne.s32.totalorder %s55, %s56
      %p65 = scmp.eq.s32.totalorder %s24, 0
      %p66 = por %p64, %p65
      %p67 = scmp.ne.s32.totalorder %s55, %s56
      %p68 = scmp.eq.s32.totalorder %s25, 1
      %p69 = por %p67, %p68
      %p71 = scmp.ne.s32.totalorder %s56, %s70
      %p72 = scmp.eq.s32.totalorder %s25, 0
      %p73 = por %p71, %p72
      %s75 = sadd.s32 %s74, 1
      %p78 = scmp.eq.s32.totalorder %s19, 1
      %p79 = scmp.ne.s32.totalorder %s74, %s76
      %p80 = scmp.eq.s32.totalorder %s19, 0
      %p81 = por %p79, %p80
      %p82 = scmp.ne.s32.totalorder %s74, %s76
      %p83 = scmp.eq.s32.totalorder %s24, 1
      %p84 = por %p82, %p83
      %p85 = scmp.ne.s32.totalorder %s76, %s77
      %p86 = scmp.eq.s32.totalorder %s24, 0
      %p87 = por %p85, %p86
      %p88 = scmp.ne.s32.totalorder %s76, %s77
      %p89 = scmp.eq.s32.totalorder %s25, 1
      %p90 = por %p88, %p89
      %p92 = scmp.ne.s32.totalorder %s77, %s91
      %p93 = scmp.eq.s32.totalorder %s25, 0
      %p94 = por %p92, %p93
      %s96 = sadd.s32 %s95, 1
      %p99 = scmp.eq.s32.totalorder %s19, 1
      %p100 = scmp.ne.s32.totalorder %s95, %s97
      %p101 = scmp.eq.s32.totalorder %s19, 0
      %p102 = por %p100, %p101
      %p103 = scmp.ne.s32.totalorder %s95, %s97
      %p104 = scmp.eq.s32.totalorder %s24, 1
      %p105 = por %p103, %p104
      %p106 = scmp.ne.s32.totalorder %s97, %s98
      %p107 = scmp.eq.s32.totalorder %s24, 0
      %p108 = por %p106, %p107
      %p109 = scmp.ne.s32.totalorder %s97, %s98
      %p110 = scmp.eq.s32.totalorder %s25, 1
      %p111 = por %p109, %p110
      %p113 = scmp.ne.s32.totalorder %s98, %s112
      %p114 = scmp.eq.s32.totalorder %s25, 0
      %p115 = por %p113, %p114
      %s117 = sadd.s32 %s116, 1
      %p120 = scmp.eq.s32.totalorder %s19, 1
      %p121 = scmp.ne.s32.totalorder %s116, %s118
      %p122 = scmp.eq.s32.totalorder %s19, 0
      %p123 = por %p121, %p122
      %p124 = scmp.ne.s32.totalorder %s116, %s118
      %p125 = scmp.eq.s32.totalorder %s24, 1
      %p126 = por %p124, %p125
      %p127 = scmp.ne.s32.totalorder %s118, %s119
      %p128 = scmp.eq.s32.totalorder %s24, 0
      %p129 = por %p127, %p128
      %p130 = scmp.ne.s32.totalorder %s118, %s119
      %p131 = scmp.eq.s32.totalorder %s25, 1
      %p132 = por %p130, %p131
      %p134 = scmp.ne.s32.totalorder %s119, %s133
      %p135 = scmp.eq.s32.totalorder %s25, 0
      %p136 = por %p134, %p135
      %s137 = ssub.s32 %s19, %s26
      %p138 = scmp.eq.s32.totalorder %s137, 0
      %s140 = sadd.s32 %s139, 1
      %s141 = scalar_select %p138, %s139, %s140
      %p144 = pneg %p138
      %p145 = scmp.eq.s32.totalorder %s19, 1
      %p146 = por %p144, %p145
      %p147 = scmp.ne.s32.totalorder %s139, %s142
      %p148 = scmp.eq.s32.totalorder %s19, 0
      %p149 = por %p147, %p148
      %p150 = scmp.ne.s32.totalorder %s139, %s142
      %p151 = scmp.eq.s32.totalorder %s24, 1
      %p152 = por %p150, %p151
      %p153 = scmp.ne.s32.totalorder %s142, %s143
      %p154 = scmp.eq.s32.totalorder %s24, 0
      %p155 = por %p153, %p154
      %p156 = scmp.ne.s32.totalorder %s142, %s143
      %p157 = scmp.eq.s32.totalorder %s25, 1
      %p158 = por %p156, %p157
      %p160 = scmp.ne.s32.totalorder %s143, %s159
      %p161 = scmp.eq.s32.totalorder %s25, 0
      %p162 = por %p160, %p161
      %p163 = scmp.le.s32.totalorder 1, %s19
      %p164 = scmp.lt.s32.totalorder %s19, 3
      %p165 = pnand %p163, %p164
      %p166 = pneg %p165
      // Predicated region
      $region9: #{tpu_custom_call.1} parent=5 // pred_check
        _
      $region10: #{tpu_custom_call.1} parent=5 // pred_check_branch
        %168 = sbr.rel (%p165) target = $region12
      $region11: #{tpu_custom_call.1} parent=5 // pred_region
        %s169 = ssub.s32 %s19, 1
        // Predicated region
        $region13: #{tpu_custom_call.1} parent=11 // pred_check
          %p170 = pneg %p66
        $region14: #{tpu_custom_call.1} parent=11 // pred_check_branch
          %172 = sbr.rel (%p170) target = $region16
        $region15: #{tpu_custom_call.1} parent=11 // pred_region
          %s174 = ssub.s32 256, 256
          %175 = vsyncadd [#allocation6], %s174
          %s176 = sshll.u32 [#allocation5], 4
          %s177 = int_to_ptr.vmem [resolvable:$true] %s176
          %182 = dma.hbm_to_vmem [thread:$0]  %s1, 256, %s177, [#allocation6], 64, 64, 4
        $region16: #{tpu_custom_call.1} parent=11 // pred_fallthru
          _
        // Predicated region
        $region17: #{tpu_custom_call.1} parent=11 // pred_check
          %p183 = pneg %p87
        $region18: #{tpu_custom_call.1} parent=11 // pred_check_branch
          %185 = sbr.rel (%p183) target = $region20
        $region19: #{tpu_custom_call.1} parent=11 // pred_region
          %s187 = ssub.s32 256, 256
          %188 = vsyncadd [#allocation6], %s187
          %s189 = sshll.u32 [#allocation7], 4
          %s190 = int_to_ptr.vmem [resolvable:$true] %s189
          %195 = dma.hbm_to_vmem [thread:$0]  %s2, 256, %s190, [#allocation6], 64, 64, 4
        $region20: #{tpu_custom_call.1} parent=11 // pred_fallthru
          _
        // Predicated region
        $region21: #{tpu_custom_call.1} parent=11 // pred_check
          %p196 = pneg %p108
        $region22: #{tpu_custom_call.1} parent=11 // pred_check_branch
          %198 = sbr.rel (%p196) target = $region24
        $region23: #{tpu_custom_call.1} parent=11 // pred_region
          %s200 = ssub.s32 256, 256
          %201 = vsyncadd [#allocation9], %s200
          %s202 = sshll.u32 [#allocation8], 4
          %s203 = int_to_ptr.vmem [resolvable:$true] %s202
          %208 = dma.hbm_to_vmem [thread:$0]  %s3, 256, %s203, [#allocation9], 64, 64, 4
        $region24: #{tpu_custom_call.1} parent=11 // pred_fallthru
          _
        // Predicated region
        $region25: #{tpu_custom_call.1} parent=11 // pred_check
          %p209 = pneg %p129
        $region26: #{tpu_custom_call.1} parent=11 // pred_check_branch
          %211 = sbr.rel (%p209) target = $region28
        $region27: #{tpu_custom_call.1} parent=11 // pred_region
          _
        $region28: #{tpu_custom_call.1} parent=11 // pred_fallthru
          _
      $region12: #{tpu_custom_call.1} parent=5 // pred_fallthru
        _
      %p212 = scmp.lt.s32.totalorder %s19, 2
      // Predicated region
      $region29: #{tpu_custom_call.1} parent=5 // pred_check
        %p213 = pneg %p212
      $region30: #{tpu_custom_call.1} parent=5 // pred_check_branch
        %215 = sbr.rel (%p213) target = $region32
      $region31: #{tpu_custom_call.1} parent=5 // pred_region
        // Predicated region
        $region33: #{tpu_custom_call.1} parent=31 // pred_check
          %p216 = pneg %p39
        $region34: #{tpu_custom_call.1} parent=31 // pred_check_branch
          %218 = sbr.rel (%p216) target = $region36
        $region35: #{tpu_custom_call.1} parent=31 // pred_region
          %s219 = sand.u32 %s29, 1
          %s220 = scalar_lea.sflag [#allocation3], %s219
          %s221 = sand.u32 %s29, 1
          %s222 = smul.addr %s221, 8
          %s223 = scalar_lea.vmem [#allocation2], %s222
          %s225 = ssub.s32 128, 128
          %226 = vsyncadd %s220, %s225
          %s227 = smul.addr %s19, 128
          %s228 = scalar_lea.hbm %s0, %s227
          %s230 = sshll.u32 %s223, 4
          %s231 = int_to_ptr.vmem [resolvable:$true] %s230
          %233 = dma.hbm_to_vmem [thread:$0]  %s228, 128, %s231, %s220
        $region36: #{tpu_custom_call.1} parent=31 // pred_fallthru
          _
      $region32: #{tpu_custom_call.1} parent=5 // pred_fallthru
        _
      %p234 = scmp.le.s32.totalorder 1, %s19
      %p235 = scmp.lt.s32.totalorder %s19, 3
      %p236 = pnand %p234, %p235
      %p237 = pneg %p236
      // Predicated region
      $region37: #{tpu_custom_call.1} parent=5 // pred_check
        _
      $region38: #{tpu_custom_call.1} parent=5 // pred_check_branch
        %239 = sbr.rel (%p236) target = $region40
      $region39: #{tpu_custom_call.1} parent=5 // pred_region
        %s240 = ssub.s32 %s19, 1
        %s241 = sand.u32 %s32, 1
        %s242 = scalar_lea.sflag [#allocation3], %s241
        %s243 = sand.u32 %s32, 1
        %s244 = smul.addr %s243, 8
        %s245 = scalar_lea.vmem [#allocation2], %s244
        // Predicated region
        $region41: #{tpu_custom_call.1} parent=39 // pred_check
          %p246 = pneg %p45
        $region42: #{tpu_custom_call.1} parent=39 // pred_check_branch
          %248 = sbr.rel (%p246) target = $region44
        $region43: #{tpu_custom_call.1} parent=39 // pred_region
          %249 = dma.done %s242, 128
        $region44: #{tpu_custom_call.1} parent=39 // pred_fallthru
          _
        // Predicated region
        $region45: #{tpu_custom_call.1} parent=39 // pred_check
          %p250 = pneg %p66
        $region46: #{tpu_custom_call.1} parent=39 // pred_check_branch
          %252 = sbr.rel (%p250) target = $region48
        $region47: #{tpu_custom_call.1} parent=39 // pred_region
          %253 = dma.done [#allocation6], 256
        $region48: #{tpu_custom_call.1} parent=39 // pred_fallthru
          _
        // Predicated region
        $region49: #{tpu_custom_call.1} parent=39 // pred_check
          %p254 = pneg %p87
        $region50: #{tpu_custom_call.1} parent=39 // pred_check_branch
          %256 = sbr.rel (%p254) target = $region52
        $region51: #{tpu_custom_call.1} parent=39 // pred_region
          %257 = dma.done [#allocation6], 256
        $region52: #{tpu_custom_call.1} parent=39 // pred_fallthru
          _
        // Predicated region
        $region53: #{tpu_custom_call.1} parent=39 // pred_check
          %p258 = pneg %p108
        $region54: #{tpu_custom_call.1} parent=39 // pred_check_branch
          %260 = sbr.rel (%p258) target = $region56
        $region55: #{tpu_custom_call.1} parent=39 // pred_region
          %261 = dma.done [#allocation9], 256
        $region56: #{tpu_custom_call.1} parent=39 // pred_fallthru
          _
        %s262 = sand.u32 %s32, 1
        %s263 = scalar_lea.sflag [#allocation3], %s262
        %s264 = sand.u32 %s32, 1
        %s265 = smul.addr %s264, 8
        %s266 = scalar_lea.vmem [#allocation2], %s265
        %p267 = pneg %p45
        %p268 = pneg %p42
        %p269 = pneg %p66
        %p270 = pneg %p63
        %p271 = pneg %p87
        %p272 = pneg %p84
        %p273 = pneg %p108
        %p274 = pneg %p105
        %p275 = pneg %p129
        %p276 = pneg %p126
        %p277 = pneg %p155
        %p278 = pneg %p152
        %s279 = sand.u32 %s142, 1
        %s280 = scalar_lea.sflag [#allocation4], %s279
        %s281 = sand.u32 %s142, 1
        %s282 = smul.addr %s281, 8
        %s283 = scalar_lea.vmem [#allocation10], %s282
        %v285 = vld [vmem:[%s245] sm:$0xff]
        %v286 = vpack.c.bf16 %v285, %v285
        %v287 = vld [vmem:[%s4] sm:$0xff]
        %v288 = vld [vmem:[#allocation5] sm:$0xf]
        %v289 = vld [vmem:[#allocation5 + $0x4] sm:$0xf]
        %v290 = vld [vmem:[#allocation5 + $0x8] sm:$0xf]
        %v291 = vld [vmem:[#allocation5 + $0xc] sm:$0xf]
        %v292 = vlaneseq
        %v293 = vshrl.u32 %v292, 7
        %v294 = vsub.s32 0, %v293
        %v295 = vrot.slane %v287, %v294
        %v300 = vunpack.c.l.b16 %v288
        %v301 = vunpack.c.l.b16 %v289
        %v302 = vunpack.c.l.b16 %v290
        %v303 = vunpack.c.l.b16 %v291
        %v304 = vpack.c.b16 %v301, %v300
        %v305 = vpack.c.b16 %v303, %v302
        %vm308 = vcmask 261120
        %v310 = vsel %vm308, %v286, 0
        %312 = vmatprep.subr.bf16.mxu0 0
        %313 = vmatpush1.bf16.msra.mxu0 %v304
        %314 = vmatprep.subr.bf16.mxu0 0
        %315 = vmatpush1.bf16.msra.mxu0 %v305
        %316 = vmatprep.subr.bf16.mxu0 0
        %317 = vmatpush1.bf16.msra.mxu0 0
        %318 = vmatprep.subr.bf16.mxu0 0
        %319 = vmatpush1.bf16.msra.mxu0 0
        %320 = vmatprep.subr.bf16.mxu0 0
        %321 = vmatpush1.bf16.msra.mxu0 0
        %322 = vmatprep.subr.bf16.mxu0 0
        %323 = vmatpush1.bf16.msra.mxu0 0
        %324 = vmatprep.subr.bf16.mxu0 0
        %325 = vmatpush1.bf16.msra.mxu0 0
        %326 = vmatprep.subr.bf16.mxu0 0
        %327 = vmatpush1.bf16.msra.mxu0 0
        %328 = vmatprep.subr.bf16.mxu0 0
        %329 = vmatpush1.bf16.msra.mxu0 0
        %330 = vmatprep.subr.bf16.mxu0 0
        %331 = vmatpush1.bf16.msra.mxu0 0
        %332 = vmatprep.subr.bf16.mxu0 0
        %333 = vmatpush1.bf16.msra.mxu0 0
        %334 = vmatprep.subr.bf16.mxu0 0
        %335 = vmatpush1.bf16.msra.mxu0 0
        %336 = vmatprep.subr.bf16.mxu0 0
        %337 = vmatpush1.bf16.msra.mxu0 0
        %338 = vmatprep.subr.bf16.mxu0 0
        %339 = vmatpush1.bf16.msra.mxu0 0
        %340 = vmatprep.subr.bf16.mxu0 0
        %341 = vmatpush1.bf16.msra.mxu0 0
        %342 = vmatprep.subr.bf16.mxu0 0
        %343 = vmatpush1.bf16.msra.mxu0 0
        %344 = vmatprep.mubr.bf16.mxu0 0
        %345 = vmatmul.mubr.bf16.gmra.mrb[0].mxu0 %v310
        %v346 = vpop.f32.mrb[0].mxu0
        %v347 = vadd.f32 %v295, %v346
        %v348 = vpop.f32.mrb[0].mxu0
        %v349 = vpop.f32.mrb[0].mxu0
        %v350 = vpop.f32.mrb[0].mxu0
        %351 = vdwg.mxu0
        %353 = vrot.lane.b32.xlu0 %v347, 120
        %v354 = vpop.permute.xlu0 %353
        %356 = vrot.lane.b32.xlu0 %v347, 112
        %v357 = vpop.permute.xlu0 %356
        %359 = vrot.lane.b32.xlu0 %v347, 104
        %v360 = vpop.permute.xlu0 %359
        %v362 = vcombine.low %v347, %v357
        %v363 = vcombine.high %v347, %v357
        %v365 = vunpack.c.l.s4 1983009808
        %v366 = vunpack.c.0.s8 %v365
        %v367 = vlaneseq
        %v368 = vshrl.u32 %v367, 7
        %v369 = vsub.s32 %v366, %v368
        %v370 = vrot.slane %v362, %v369
        %v372 = vunpack.c.l.s4 1983009808
        %v373 = vunpack.c.0.s8 %v372
        %v374 = vlaneseq
        %v375 = vshrl.u32 %v374, 7
        %v376 = vsub.s32 %v373, %v375
        %v377 = vrot.slane %v363, %v376
        %v378 = vcombine.low %v354, %v360
        %v379 = vcombine.high %v354, %v360
        %v381 = vunpack.c.l.s4 1983009808
        %v382 = vunpack.c.0.s8 %v381
        %v383 = vlaneseq
        %v384 = vshrl.u32 %v383, 7
        %v385 = vsub.s32 %v382, %v384
        %v386 = vrot.slane %v378, %v385
        %v388 = vunpack.c.l.s4 1983009808
        %v389 = vunpack.c.0.s8 %v388
        %v390 = vlaneseq
        %v391 = vshrl.u32 %v390, 7
        %v392 = vsub.s32 %v389, %v391
        %v393 = vrot.slane %v379, %v392
        %v394 = vcombine.low %v370, %v386
        %v395 = vcombine.high %v370, %v386
        %v397 = vunpack.c.l.s4 1934713408
        %v398 = vunpack.c.0.s8 %v397
        %v399 = vlaneseq
        %v400 = vshrl.u32 %v399, 7
        %v401 = vsub.s32 %v398, %v400
        %v402 = vrot.slane %v394, %v401
        %v404 = vunpack.c.l.s4 1934713408
        %v405 = vunpack.c.0.s8 %v404
        %v406 = vlaneseq
        %v407 = vshrl.u32 %v406, 7
        %v408 = vsub.s32 %v405, %v407
        %v409 = vrot.slane %v395, %v408
        %v410 = vcombine.low %v377, %v393
        %v411 = vcombine.high %v377, %v393
        %v413 = vunpack.c.l.s4 1934713408
        %v414 = vunpack.c.0.s8 %v413
        %v415 = vlaneseq
        %v416 = vshrl.u32 %v415, 7
        %v417 = vsub.s32 %v414, %v416
        %v418 = vrot.slane %v410, %v417
        %v420 = vunpack.c.l.s4 1934713408
        %v421 = vunpack.c.0.s8 %v420
        %v422 = vlaneseq
        %v423 = vshrl.u32 %v422, 7
        %v424 = vsub.s32 %v421, %v423
        %v425 = vrot.slane %v411, %v424
        %v426 = vcombine.high %v402, 0.0
        %v427 = vcombine.high %v409, 0.0
        %v428 = vcombine.high %v418, 0.0
        %v429 = vcombine.high %v425, 0.0
        %v430 = vcombine.low %v402, %v409
        %v432 = vunpack.c.l.s4 1983009808
        %v433 = vunpack.c.0.s8 %v432
        %v434 = vlaneseq
        %v435 = vshrl.u32 %v434, 7
        %v436 = vsub.s32 %v433, %v435
        %v437 = vrot.slane %v430, %v436
        %v438 = vcombine.low %v426, %v427
        %v440 = vunpack.c.l.s4 1983009808
        %v441 = vunpack.c.0.s8 %v440
        %v442 = vlaneseq
        %v443 = vshrl.u32 %v442, 7
        %v444 = vsub.s32 %v441, %v443
        %v445 = vrot.slane %v438, %v444
        %v446 = vcombine.low %v418, %v425
        %v448 = vunpack.c.l.s4 1983009808
        %v449 = vunpack.c.0.s8 %v448
        %v450 = vlaneseq
        %v451 = vshrl.u32 %v450, 7
        %v452 = vsub.s32 %v449, %v451
        %v453 = vrot.slane %v446, %v452
        %v454 = vcombine.low %v428, %v429
        %v456 = vunpack.c.l.s4 1983009808
        %v457 = vunpack.c.0.s8 %v456
        %v458 = vlaneseq
        %v459 = vshrl.u32 %v458, 7
        %v460 = vsub.s32 %v457, %v459
        %v461 = vrot.slane %v454, %v460
        %v462 = vcombine.low %v437, %v445
        %v463 = vcombine.high %v437, %v445
        %v465 = vunpack.c.l.s4 1934713408
        %v466 = vunpack.c.0.s8 %v465
        %v467 = vlaneseq
        %v468 = vshrl.u32 %v467, 7
        %v469 = vsub.s32 %v466, %v468
        %v470 = vrot.slane %v462, %v469
        %v472 = vunpack.c.l.s4 1934713408
        %v473 = vunpack.c.0.s8 %v472
        %v474 = vlaneseq
        %v475 = vshrl.u32 %v474, 7
        %v476 = vsub.s32 %v473, %v475
        %v477 = vrot.slane %v463, %v476
        %v478 = vcombine.low %v453, %v461
        %v479 = vcombine.high %v453, %v461
        %v481 = vunpack.c.l.s4 1934713408
        %v482 = vunpack.c.0.s8 %v481
        %v483 = vlaneseq
        %v484 = vshrl.u32 %v483, 7
        %v485 = vsub.s32 %v482, %v484
        %v486 = vrot.slane %v478, %v485
        %v488 = vunpack.c.l.s4 1934713408
        %v489 = vunpack.c.0.s8 %v488
        %v490 = vlaneseq
        %v491 = vshrl.u32 %v490, 7
        %v492 = vsub.s32 %v489, %v491
        %v493 = vrot.slane %v479, %v492
        %v494 = vcombine.low %v470, %v486
        %v495 = vcombine.high %v470, %v486
        %v496 = vcombine.low %v477, %v493
        %v497 = vcombine.high %v477, %v493
        %v498 = vpack.c.bf16 %v494, %v494
        %v499 = vpack.c.bf16 %v495, %v495
        %v500 = vpack.c.bf16 %v496, %v496
        %v501 = vpack.c.bf16 %v497, %v497
        %502 = vrot.lane.b32.xlu0 %v347, 96
        %v503 = vpop.permute.xlu0 %502
        %504 = vrot.lane.b32.xlu0 %v354, 96
        %v505 = vpop.permute.xlu0 %504
        %506 = vrot.lane.b32.xlu0 %v357, 96
        %v507 = vpop.permute.xlu0 %506
        %508 = vrot.lane.b32.xlu0 %v360, 96
        %v509 = vpop.permute.xlu0 %508
        %v514 = vcombine.low %v503, %v507
        %v515 = vcombine.high %v503, %v507
        %v517 = vunpack.c.l.s4 1983009808
        %v518 = vunpack.c.0.s8 %v517
        %v519 = vlaneseq
        %v520 = vshrl.u32 %v519, 7
        %v521 = vsub.s32 %v518, %v520
        %v522 = vrot.slane %v514, %v521
        %v524 = vunpack.c.l.s4 1983009808
        %v525 = vunpack.c.0.s8 %v524
        %v526 = vlaneseq
        %v527 = vshrl.u32 %v526, 7
        %v528 = vsub.s32 %v525, %v527
        %v529 = vrot.slane %v515, %v528
        %v530 = vcombine.low %v505, %v509
        %v531 = vcombine.high %v505, %v509
        %v533 = vunpack.c.l.s4 1983009808
        %v534 = vunpack.c.0.s8 %v533
        %v535 = vlaneseq
        %v536 = vshrl.u32 %v535, 7
        %v537 = vsub.s32 %v534, %v536
        %v538 = vrot.slane %v530, %v537
        %v540 = vunpack.c.l.s4 1983009808
        %v541 = vunpack.c.0.s8 %v540
        %v542 = vlaneseq
        %v543 = vshrl.u32 %v542, 7
        %v544 = vsub.s32 %v541, %v543
        %v545 = vrot.slane %v531, %v544
        %v546 = vcombine.low %v522, %v538
        %v547 = vcombine.high %v522, %v538
        %v549 = vunpack.c.l.s4 1934713408
        %v550 = vunpack.c.0.s8 %v549
        %v551 = vlaneseq
        %v552 = vshrl.u32 %v551, 7
        %v553 = vsub.s32 %v550, %v552
        %v554 = vrot.slane %v546, %v553
        %v556 = vunpack.c.l.s4 1934713408
        %v557 = vunpack.c.0.s8 %v556
        %v558 = vlaneseq
        %v559 = vshrl.u32 %v558, 7
        %v560 = vsub.s32 %v557, %v559
        %v561 = vrot.slane %v547, %v560
        %v562 = vcombine.low %v529, %v545
        %v563 = vcombine.high %v529, %v545
        %v565 = vunpack.c.l.s4 1934713408
        %v566 = vunpack.c.0.s8 %v565
        %v567 = vlaneseq
        %v568 = vshrl.u32 %v567, 7
        %v569 = vsub.s32 %v566, %v568
        %v570 = vrot.slane %v562, %v569
        %v572 = vunpack.c.l.s4 1934713408
        %v573 = vunpack.c.0.s8 %v572
        %v574 = vlaneseq
        %v575 = vshrl.u32 %v574, 7
        %v576 = vsub.s32 %v573, %v575
        %v577 = vrot.slane %v563, %v576
        %v578 = vcombine.high %v554, 0.0
        %v579 = vcombine.high %v561, 0.0
        %v580 = vcombine.high %v570, 0.0
        %v581 = vcombine.high %v577, 0.0
        %v582 = vcombine.low %v554, %v561
        %v584 = vunpack.c.l.s4 1983009808
        %v585 = vunpack.c.0.s8 %v584
        %v586 = vlaneseq
        %v587 = vshrl.u32 %v586, 7
        %v588 = vsub.s32 %v585, %v587
        %v589 = vrot.slane %v582, %v588
        %v590 = vcombine.low %v578, %v579
        %v592 = vunpack.c.l.s4 1983009808
        %v593 = vunpack.c.0.s8 %v592
        %v594 = vlaneseq
        %v595 = vshrl.u32 %v594, 7
        %v596 = vsub.s32 %v593, %v595
        %v597 = vrot.slane %v590, %v596
        %v598 = vcombine.low %v570, %v577
        %v600 = vunpack.c.l.s4 1983009808
        %v601 = vunpack.c.0.s8 %v600
        %v602 = vlaneseq
        %v603 = vshrl.u32 %v602, 7
        %v604 = vsub.s32 %v601, %v603
        %v605 = vrot.slane %v598, %v604
        %v606 = vcombine.low %v580, %v581
        %v608 = vunpack.c.l.s4 1983009808
        %v609 = vunpack.c.0.s8 %v608
        %v610 = vlaneseq
        %v611 = vshrl.u32 %v610, 7
        %v612 = vsub.s32 %v609, %v611
        %v613 = vrot.slane %v606, %v612
        %v614 = vcombine.low %v589, %v597
        %v615 = vcombine.high %v589, %v597
        %v617 = vunpack.c.l.s4 1934713408
        %v618 = vunpack.c.0.s8 %v617
        %v619 = vlaneseq
        %v620 = vshrl.u32 %v619, 7
        %v621 = vsub.s32 %v618, %v620
        %v622 = vrot.slane %v614, %v621
        %v624 = vunpack.c.l.s4 1934713408
        %v625 = vunpack.c.0.s8 %v624
        %v626 = vlaneseq
        %v627 = vshrl.u32 %v626, 7
        %v628 = vsub.s32 %v625, %v627
        %v629 = vrot.slane %v615, %v628
        %v630 = vcombine.low %v605, %v613
        %v631 = vcombine.high %v605, %v613
        %v633 = vunpack.c.l.s4 1934713408
        %v634 = vunpack.c.0.s8 %v633
        %v635 = vlaneseq
        %v636 = vshrl.u32 %v635, 7
        %v637 = vsub.s32 %v634, %v636
        %v638 = vrot.slane %v630, %v637
        %v640 = vunpack.c.l.s4 1934713408
        %v641 = vunpack.c.0.s8 %v640
        %v642 = vlaneseq
        %v643 = vshrl.u32 %v642, 7
        %v644 = vsub.s32 %v641, %v643
        %v645 = vrot.slane %v631, %v644
        %v646 = vcombine.low %v622, %v638
        %v647 = vcombine.high %v622, %v638
        %v648 = vcombine.low %v629, %v645
        %v649 = vcombine.high %v629, %v645
        %v650 = vpack.c.bf16 %v646, %v646
        %v651 = vpack.c.bf16 %v647, %v647
        %v652 = vpack.c.bf16 %v648, %v648
        %v653 = vpack.c.bf16 %v649, %v649
        %654 = vrot.lane.b32.xlu0 %v347, 64
        %v655 = vpop.permute.xlu0 %654
        %656 = vrot.lane.b32.xlu0 %v354, 64
        %v657 = vpop.permute.xlu0 %656
        %658 = vrot.lane.b32.xlu0 %v357, 64
        %v659 = vpop.permute.xlu0 %658
        %660 = vrot.lane.b32.xlu0 %v360, 64
        %v661 = vpop.permute.xlu0 %660
        %v666 = vcombine.low %v655, %v659
        %v667 = vcombine.high %v655, %v659
        %v669 = vunpack.c.l.s4 1983009808
        %v670 = vunpack.c.0.s8 %v669
        %v671 = vlaneseq
        %v672 = vshrl.u32 %v671, 7
        %v673 = vsub.s32 %v670, %v672
        %v674 = vrot.slane %v666, %v673
        %v676 = vunpack.c.l.s4 1983009808
        %v677 = vunpack.c.0.s8 %v676
        %v678 = vlaneseq
        %v679 = vshrl.u32 %v678, 7
        %v680 = vsub.s32 %v677, %v679
        %v681 = vrot.slane %v667, %v680
        %v682 = vcombine.low %v657, %v661
        %v683 = vcombine.high %v657, %v661
        %v685 = vunpack.c.l.s4 1983009808
        %v686 = vunpack.c.0.s8 %v685
        %v687 = vlaneseq
        %v688 = vshrl.u32 %v687, 7
        %v689 = vsub.s32 %v686, %v688
        %v690 = vrot.slane %v682, %v689
        %v692 = vunpack.c.l.s4 1983009808
        %v693 = vunpack.c.0.s8 %v692
        %v694 = vlaneseq
        %v695 = vshrl.u32 %v694, 7
        %v696 = vsub.s32 %v693, %v695
        %v697 = vrot.slane %v683, %v696
        %v698 = vcombine.low %v674, %v690
        %v699 = vcombine.high %v674, %v690
        %v701 = vunpack.c.l.s4 1934713408
        %v702 = vunpack.c.0.s8 %v701
        %v703 = vlaneseq
        %v704 = vshrl.u32 %v703, 7
        %v705 = vsub.s32 %v702, %v704
        %v706 = vrot.slane %v698, %v705
        %v708 = vunpack.c.l.s4 1934713408
        %v709 = vunpack.c.0.s8 %v708
        %v710 = vlaneseq
        %v711 = vshrl.u32 %v710, 7
        %v712 = vsub.s32 %v709, %v711
        %v713 = vrot.slane %v699, %v712
        %v714 = vcombine.low %v681, %v697
        %v715 = vcombine.high %v681, %v697
        %v717 = vunpack.c.l.s4 1934713408
        %v718 = vunpack.c.0.s8 %v717
        %v719 = vlaneseq
        %v720 = vshrl.u32 %v719, 7
        %v721 = vsub.s32 %v718, %v720
        %v722 = vrot.slane %v714, %v721
        %v724 = vunpack.c.l.s4 1934713408
        %v725 = vunpack.c.0.s8 %v724
        %v726 = vlaneseq
        %v727 = vshrl.u32 %v726, 7
        %v728 = vsub.s32 %v725, %v727
        %v729 = vrot.slane %v715, %v728
        %v730 = vcombine.high %v706, 0.0
        %v731 = vcombine.high %v713, 0.0
        %v732 = vcombine.high %v722, 0.0
        %v733 = vcombine.high %v729, 0.0
        %v734 = vcombine.low %v706, %v713
        %v736 = vunpack.c.l.s4 1983009808
        %v737 = vunpack.c.0.s8 %v736
        %v738 = vlaneseq
        %v739 = vshrl.u32 %v738, 7
        %v740 = vsub.s32 %v737, %v739
        %v741 = vrot.slane %v734, %v740
        %v742 = vcombine.low %v730, %v731
        %v744 = vunpack.c.l.s4 1983009808
        %v745 = vunpack.c.0.s8 %v744
        %v746 = vlaneseq
        %v747 = vshrl.u32 %v746, 7
        %v748 = vsub.s32 %v745, %v747
        %v749 = vrot.slane %v742, %v748
        %v750 = vcombine.low %v722, %v729
        %v752 = vunpack.c.l.s4 1983009808
        %v753 = vunpack.c.0.s8 %v752
        %v754 = vlaneseq
        %v755 = vshrl.u32 %v754, 7
        %v756 = vsub.s32 %v753, %v755
        %v757 = vrot.slane %v750, %v756
        %v758 = vcombine.low %v732, %v733
        %v760 = vunpack.c.l.s4 1983009808
        %v761 = vunpack.c.0.s8 %v760
        %v762 = vlaneseq
        %v763 = vshrl.u32 %v762, 7
        %v764 = vsub.s32 %v761, %v763
        %v765 = vrot.slane %v758, %v764
        %v766 = vcombine.low %v741, %v749
        %v767 = vcombine.high %v741, %v749
        %v769 = vunpack.c.l.s4 1934713408
        %v770 = vunpack.c.0.s8 %v769
        %v771 = vlaneseq
        %v772 = vshrl.u32 %v771, 7
        %v773 = vsub.s32 %v770, %v772
        %v774 = vrot.slane %v766, %v773
        %v776 = vunpack.c.l.s4 1934713408
        %v777 = vunpack.c.0.s8 %v776
        %v778 = vlaneseq
        %v779 = vshrl.u32 %v778, 7
        %v780 = vsub.s32 %v777, %v779
        %v781 = vrot.slane %v767, %v780
        %v782 = vcombine.low %v757, %v765
        %v783 = vcombine.high %v757, %v765
        %v785 = vunpack.c.l.s4 1934713408
        %v786 = vunpack.c.0.s8 %v785
        %v787 = vlaneseq
        %v788 = vshrl.u32 %v787, 7
        %v789 = vsub.s32 %v786, %v788
        %v790 = vrot.slane %v782, %v789
        %v792 = vunpack.c.l.s4 1934713408
        %v793 = vunpack.c.0.s8 %v792
        %v794 = vlaneseq
        %v795 = vshrl.u32 %v794, 7
        %v796 = vsub.s32 %v793, %v795
        %v797 = vrot.slane %v783, %v796
        %v798 = vcombine.low %v774, %v790
        %v799 = vcombine.high %v774, %v790
        %v800 = vcombine.low %v781, %v797
        %v801 = vcombine.high %v781, %v797
        %v802 = vpack.c.bf16 %v798, %v798
        %v803 = vpack.c.bf16 %v799, %v799
        %v804 = vpack.c.bf16 %v800, %v800
        %v805 = vpack.c.bf16 %v801, %v801
        %vm806 = vcmask 64512
        %v808 = vsel %vm806, %v498, 0
        %v811 = vsel %vm806, %v650, 0
        %813 = vmatprep.subr.bf16.mxu0 0
        %814 = vmatpush1.bf16.xpose.msra.mxu0 %v811
        %815 = vmatprep.subr.bf16.mxu0 0
        %816 = vmatpush1.bf16.xpose.msra.mxu0 0
        %817 = vmatprep.subr.bf16.mxu0 0
        %818 = vmatpush1.bf16.xpose.msra.mxu0 0
        %819 = vmatprep.subr.bf16.mxu0 0
        %820 = vmatpush1.bf16.xpose.msra.mxu0 0
        %821 = vmatprep.subr.bf16.mxu0 0
        %822 = vmatpush1.bf16.xpose.msra.mxu0 0
        %823 = vmatprep.subr.bf16.mxu0 0
        %824 = vmatpush1.bf16.xpose.msra.mxu0 0
        %825 = vmatprep.subr.bf16.mxu0 0
        %826 = vmatpush1.bf16.xpose.msra.mxu0 0
        %827 = vmatprep.subr.bf16.mxu0 0
        %828 = vmatpush1.bf16.xpose.msra.mxu0 0
        %829 = vmatprep.subr.bf16.mxu0 0
        %830 = vmatpush1.bf16.xpose.msra.mxu0 0
        %831 = vmatprep.subr.bf16.mxu0 0
        %832 = vmatpush1.bf16.xpose.msra.mxu0 0
        %833 = vmatprep.subr.bf16.mxu0 0
        %834 = vmatpush1.bf16.xpose.msra.mxu0 0
        %835 = vmatprep.subr.bf16.mxu0 0
        %836 = vmatpush1.bf16.xpose.msra.mxu0 0
        %837 = vmatprep.subr.bf16.mxu0 0
        %838 = vmatpush1.bf16.xpose.msra.mxu0 0
        %839 = vmatprep.subr.bf16.mxu0 0
        %840 = vmatpush1.bf16.xpose.msra.mxu0 0
        %841 = vmatprep.subr.bf16.mxu0 0
        %842 = vmatpush1.bf16.xpose.msra.mxu0 0
        %843 = vmatprep.subr.bf16.mxu0 0
        %844 = vmatpush1.bf16.xpose.msra.mxu0 0
        %845 = vmatprep.mubr.bf16.mxu0 0
        %846 = vmatmul.mubr.bf16.gmra.mrb[0].mxu0 %v808
        %v847 = vpop.f32.mrb[0].mxu0
        %v848 = vadd.f32 0.0, %v847
        %v849 = vpop.f32.mrb[0].mxu0
        %v850 = vpop.f32.mrb[0].mxu0
        %v851 = vpop.f32.mrb[0].mxu0
        %852 = vdwg.mxu0
        %v854 = vsel %vm806, %v499, 0
        %v857 = vsel %vm806, %v651, 0
        %859 = vmatprep.subr.bf16.mxu0 0
        %860 = vmatpush1.bf16.xpose.msra.mxu0 %v857
        %861 = vmatprep.subr.bf16.mxu0 0
        %862 = vmatpush1.bf16.xpose.msra.mxu0 0
        %863 = vmatprep.subr.bf16.mxu0 0
        %864 = vmatpush1.bf16.xpose.msra.mxu0 0
        %865 = vmatprep.subr.bf16.mxu0 0
        %866 = vmatpush1.bf16.xpose.msra.mxu0 0
        %867 = vmatprep.subr.bf16.mxu0 0
        %868 = vmatpush1.bf16.xpose.msra.mxu0 0
        %869 = vmatprep.subr.bf16.mxu0 0
        %870 = vmatpush1.bf16.xpose.msra.mxu0 0
        %871 = vmatprep.subr.bf16.mxu0 0
        %872 = vmatpush1.bf16.xpose.msra.mxu0 0
        %873 = vmatprep.subr.bf16.mxu0 0
        %874 = vmatpush1.bf16.xpose.msra.mxu0 0
        %875 = vmatprep.subr.bf16.mxu0 0
        %876 = vmatpush1.bf16.xpose.msra.mxu0 0
        %877 = vmatprep.subr.bf16.mxu0 0
        %878 = vmatpush1.bf16.xpose.msra.mxu0 0
        %879 = vmatprep.subr.bf16.mxu0 0
        %880 = vmatpush1.bf16.xpose.msra.mxu0 0
        %881 = vmatprep.subr.bf16.mxu0 0
        %882 = vmatpush1.bf16.xpose.msra.mxu0 0
        %883 = vmatprep.subr.bf16.mxu0 0
        %884 = vmatpush1.bf16.xpose.msra.mxu0 0
        %885 = vmatprep.subr.bf16.mxu0 0
        %886 = vmatpush1.bf16.xpose.msra.mxu0 0
        %887 = vmatprep.subr.bf16.mxu0 0
        %888 = vmatpush1.bf16.xpose.msra.mxu0 0
        %889 = vmatprep.subr.bf16.mxu0 0
        %890 = vmatpush1.bf16.xpose.msra.mxu0 0
        %891 = vmatprep.mubr.bf16.mxu0 0
        %892 = vmatmul.mubr.bf16.gmra.mrb[0].mxu0 %v854
        %v893 = vpop.f32.mrb[0].mxu0
        %v894 = vadd.f32 0.0, %v893
        %v895 = vpop.f32.mrb[0].mxu0
        %v896 = vpop.f32.mrb[0].mxu0
        %v897 = vpop.f32.mrb[0].mxu0
        %898 = vdwg.mxu0
        %v900 = vsel %vm806, %v500, 0
        %v903 = vsel %vm806, %v652, 0
        %905 = vmatprep.subr.bf16.mxu0 0
        %906 = vmatpush1.bf16.xpose.msra.mxu0 %v903
        %907 = vmatprep.subr.bf16.mxu0 0
        %908 = vmatpush1.bf16.xpose.msra.mxu0 0
        %909 = vmatprep.subr.bf16.mxu0 0
        %910 = vmatpush1.bf16.xpose.msra.mxu0 0
        %911 = vmatprep.subr.bf16.mxu0 0
        %912 = vmatpush1.bf16.xpose.msra.mxu0 0
        %913 = vmatprep.subr.bf16.mxu0 0
        %914 = vmatpush1.bf16.xpose.msra.mxu0 0
        %915 = vmatprep.subr.bf16.mxu0 0
        %916 = vmatpush1.bf16.xpose.msra.mxu0 0
        %917 = vmatprep.subr.bf16.mxu0 0
        %918 = vmatpush1.bf16.xpose.msra.mxu0 0
        %919 = vmatprep.subr.bf16.mxu0 0
        %920 = vmatpush1.bf16.xpose.msra.mxu0 0
        %921 = vmatprep.subr.bf16.mxu0 0
        %922 = vmatpush1.bf16.xpose.msra.mxu0 0
        %923 = vmatprep.subr.bf16.mxu0 0
        %924 = vmatpush1.bf16.xpose.msra.mxu0 0
        %925 = vmatprep.subr.bf16.mxu0 0
        %926 = vmatpush1.bf16.xpose.msra.mxu0 0
        %927 = vmatprep.subr.bf16.mxu0 0
        %928 = vmatpush1.bf16.xpose.msra.mxu0 0
        %929 = vmatprep.subr.bf16.mxu0 0
        %930 = vmatpush1.bf16.xpose.msra.mxu0 0
        %931 = vmatprep.subr.bf16.mxu0 0
        %932 = vmatpush1.bf16.xpose.msra.mxu0 0
        %933 = vmatprep.subr.bf16.mxu0 0
        %934 = vmatpush1.bf16.xpose.msra.mxu0 0
        %935 = vmatprep.subr.bf16.mxu0 0
        %936 = vmatpush1.bf16.xpose.msra.mxu0 0
        %937 = vmatprep.mubr.bf16.mxu0 0
        %938 = vmatmul.mubr.bf16.gmra.mrb[0].mxu0 %v900
        %v939 = vpop.f32.mrb[0].mxu0
        %v940 = vadd.f32 0.0, %v939
        %v941 = vpop.f32.mrb[0].mxu0
        %v942 = vpop.f32.mrb[0].mxu0
        %v943 = vpop.f32.mrb[0].mxu0
        %944 = vdwg.mxu0
        %v946 = vsel %vm806, %v501, 0
        %v949 = vsel %vm806, %v653, 0
        %951 = vmatprep.subr.bf16.mxu0 0
        %952 = vmatpush1.bf16.xpose.msra.mxu0 %v949
        %953 = vmatprep.subr.bf16.mxu0 0
        %954 = vmatpush1.bf16.xpose.msra.mxu0 0
        %955 = vmatprep.subr.bf16.mxu0 0
        %956 = vmatpush1.bf16.xpose.msra.mxu0 0
        %957 = vmatprep.subr.bf16.mxu0 0
        %958 = vmatpush1.bf16.xpose.msra.mxu0 0
        %959 = vmatprep.subr.bf16.mxu0 0
        %960 = vmatpush1.bf16.xpose.msra.mxu0 0
        %961 = vmatprep.subr.bf16.mxu0 0
        %962 = vmatpush1.bf16.xpose.msra.mxu0 0
        %963 = vmatprep.subr.bf16.mxu0 0
        %964 = vmatpush1.bf16.xpose.msra.mxu0 0
        %965 = vmatprep.subr.bf16.mxu0 0
        %966 = vmatpush1.bf16.xpose.msra.mxu0 0
        %967 = vmatprep.subr.bf16.mxu0 0
        %968 = vmatpush1.bf16.xpose.msra.mxu0 0
        %969 = vmatprep.subr.bf16.mxu0 0
        %970 = vmatpush1.bf16.xpose.msra.mxu0 0
        %971 = vmatprep.subr.bf16.mxu0 0
        %972 = vmatpush1.bf16.xpose.msra.mxu0 0
        %973 = vmatprep.subr.bf16.mxu0 0
        %974 = vmatpush1.bf16.xpose.msra.mxu0 0
        %975 = vmatprep.subr.bf16.mxu0 0
        %976 = vmatpush1.bf16.xpose.msra.mxu0 0
        %977 = vmatprep.subr.bf16.mxu0 0
        %978 = vmatpush1.bf16.xpose.msra.mxu0 0
        %979 = vmatprep.subr.bf16.mxu0 0
        %980 = vmatpush1.bf16.xpose.msra.mxu0 0
        %981 = vmatprep.subr.bf16.mxu0 0
        %982 = vmatpush1.bf16.xpose.msra.mxu0 0
        %983 = vmatprep.mubr.bf16.mxu0 0
        %984 = vmatmul.mubr.bf16.gmra.mrb[0].mxu0 %v946
        %v985 = vpop.f32.mrb[0].mxu0
        %v986 = vadd.f32 0.0, %v985
        %v987 = vpop.f32.mrb[0].mxu0
        %v988 = vpop.f32.mrb[0].mxu0
        %v989 = vpop.f32.mrb[0].mxu0
        %990 = vdwg.mxu0
        %v991 = vsel %vm806, %v848, -inf
        %992 = vmax.xlane.f32.xlu0 %v991
        %v993 = vpop.xlane.xlu0 %992
        %v994 = vsel %vm806, %v894, -inf
        %995 = vmax.xlane.f32.xlu0 %v994
        %v996 = vpop.xlane.xlu0 %995
        %v997 = vsel %vm806, %v940, -inf
        %998 = vmax.xlane.f32.xlu0 %v997
        %v999 = vpop.xlane.xlu0 %998
        %v1000 = vsel %vm806, %v986, -inf
        %1001 = vmax.xlane.f32.xlu0 %v1000
        %v1002 = vpop.xlane.xlu0 %1001
        %v1003 = vsub.f32 %v848, %v993
        %v1004 = vsub.f32 %v894, %v996
        %v1005 = vsub.f32 %v940, %v999
        %v1006 = vsub.f32 %v986, %v1002
        %v1007 = vmul.f32 %v1003, 1.442695
        %v1008 = vpow.pop %v1007
        %v1009 = vmul.f32 %v1004, 1.442695
        %v1010 = vpow.pop %v1009
        %v1011 = vmul.f32 %v1005, 1.442695
        %v1012 = vpow.pop %v1011
        %v1013 = vmul.f32 %v1006, 1.442695
        %v1014 = vpow.pop %v1013
        %v1015 = vsel %vm806, %v1008, 0.0
        %1016 = vadd.xlane.f32.xlu0 %v1015
        %v1017 = vpop.xlane.xlu0 %1016
        %v1018 = vsel %vm806, %v1010, 0.0
        %1019 = vadd.xlane.f32.xlu0 %v1018
        %v1020 = vpop.xlane.xlu0 %1019
        %v1021 = vsel %vm806, %v1012, 0.0
        %1022 = vadd.xlane.f32.xlu0 %v1021
        %v1023 = vpop.xlane.xlu0 %1022
        %v1024 = vsel %vm806, %v1014, 0.0
        %1025 = vadd.xlane.f32.xlu0 %v1024
        %v1026 = vpop.xlane.xlu0 %1025
        %v1027 = vrcp.pop %v1017
        %v1028 = vmul.f32 %v1008, %v1027
        %v1029 = vrcp.pop %v1020
        %v1030 = vmul.f32 %v1010, %v1029
        %v1031 = vrcp.pop %v1023
        %v1032 = vmul.f32 %v1012, %v1031
        %v1033 = vrcp.pop %v1026
        %v1034 = vmul.f32 %v1014, %v1033
        %v1035 = vpack.c.bf16 %v1028, %v1028
        %v1036 = vpack.c.bf16 %v1030, %v1030
        %v1037 = vpack.c.bf16 %v1032, %v1032
        %v1038 = vpack.c.bf16 %v1034, %v1034
        %v1040 = vsel %vm806, %v1035, 0
        %vm1042 = vcmask 1043456
        %v1044 = vsel %vm1042, %v802, 0
        %1046 = vmatprep.subr.bf16.mxu0 0
        %1047 = vmatpush1.bf16.msra.mxu0 %v1044
        %1048 = vmatprep.subr.bf16.mxu0 0
        %1049 = vmatpush1.bf16.msra.mxu0 0
        %1050 = vmatprep.subr.bf16.mxu0 0
        %1051 = vmatpush1.bf16.msra.mxu0 0
        %1052 = vmatprep.subr.bf16.mxu0 0
        %1053 = vmatpush1.bf16.msra.mxu0 0
        %1054 = vmatprep.subr.bf16.mxu0 0
        %1055 = vmatpush1.bf16.msra.mxu0 0
        %1056 = vmatprep.subr.bf16.mxu0 0
        %1057 = vmatpush1.bf16.msra.mxu0 0
        %1058 = vmatprep.subr.bf16.mxu0 0
        %1059 = vmatpush1.bf16.msra.mxu0 0
        %1060 = vmatprep.subr.bf16.mxu0 0
        %1061 = vmatpush1.bf16.msra.mxu0 0
        %1062 = vmatprep.subr.bf16.mxu0 0
        %1063 = vmatpush1.bf16.msra.mxu0 0
        %1064 = vmatprep.subr.bf16.mxu0 0
        %1065 = vmatpush1.bf16.msra.mxu0 0
        %1066 = vmatprep.subr.bf16.mxu0 0
        %1067 = vmatpush1.bf16.msra.mxu0 0
        %1068 = vmatprep.subr.bf16.mxu0 0
        %1069 = vmatpush1.bf16.msra.mxu0 0
        %1070 = vmatprep.subr.bf16.mxu0 0
        %1071 = vmatpush1.bf16.msra.mxu0 0
        %1072 = vmatprep.subr.bf16.mxu0 0
        %1073 = vmatpush1.bf16.msra.mxu0 0
        %1074 = vmatprep.subr.bf16.mxu0 0
        %1075 = vmatpush1.bf16.msra.mxu0 0
        %1076 = vmatprep.subr.bf16.mxu0 0
        %1077 = vmatpush1.bf16.msra.mxu0 0
        %1078 = vmatprep.mubr.bf16.mxu0 0
        %1079 = vmatmul.mubr.bf16.gmra.mrb[0].mxu0 %v1040
        %v1080 = vpop.f32.mrb[0].mxu0
        %v1081 = vadd.f32 0.0, %v1080
        %v1082 = vpop.f32.mrb[0].mxu0
        %v1083 = vpop.f32.mrb[0].mxu0
        %v1084 = vpop.f32.mrb[0].mxu0
        %1085 = vdwg.mxu0
        %v1087 = vsel %vm806, %v1036, 0
        %v1090 = vsel %vm1042, %v803, 0
        %1092 = vmatprep.subr.bf16.mxu0 0
        %1093 = vmatpush1.bf16.msra.mxu0 %v1090
        %1094 = vmatprep.subr.bf16.mxu0 0
        %1095 = vmatpush1.bf16.msra.mxu0 0
        %1096 = vmatprep.subr.bf16.mxu0 0
        %1097 = vmatpush1.bf16.msra.mxu0 0
        %1098 = vmatprep.subr.bf16.mxu0 0
        %1099 = vmatpush1.bf16.msra.mxu0 0
        %1100 = vmatprep.subr.bf16.mxu0 0
        %1101 = vmatpush1.bf16.msra.mxu0 0
        %1102 = vmatprep.subr.bf16.mxu0 0
        %1103 = vmatpush1.bf16.msra.mxu0 0
        %1104 = vmatprep.subr.bf16.mxu0 0
        %1105 = vmatpush1.bf16.msra.mxu0 0
        %1106 = vmatprep.subr.bf16.mxu0 0
        %1107 = vmatpush1.bf16.msra.mxu0 0
        %1108 = vmatprep.subr.bf16.mxu0 0
        %1109 = vmatpush1.bf16.msra.mxu0 0
        %1110 = vmatprep.subr.bf16.mxu0 0
        %1111 = vmatpush1.bf16.msra.mxu0 0
        %1112 = vmatprep.subr.bf16.mxu0 0
        %1113 = vmatpush1.bf16.msra.mxu0 0
        %1114 = vmatprep.subr.bf16.mxu0 0
        %1115 = vmatpush1.bf16.msra.mxu0 0
        %1116 = vmatprep.subr.bf16.mxu0 0
        %1117 = vmatpush1.bf16.msra.mxu0 0
        %1118 = vmatprep.subr.bf16.mxu0 0
        %1119 = vmatpush1.bf16.msra.mxu0 0
        %1120 = vmatprep.subr.bf16.mxu0 0
        %1121 = vmatpush1.bf16.msra.mxu0 0
        %1122 = vmatprep.subr.bf16.mxu0 0
        %1123 = vmatpush1.bf16.msra.mxu0 0
        %1124 = vmatprep.mubr.bf16.mxu0 0
        %1125 = vmatmul.mubr.bf16.gmra.mrb[0].mxu0 %v1087
        %v1126 = vpop.f32.mrb[0].mxu0
        %v1127 = vadd.f32 0.0, %v1126
        %v1128 = vpop.f32.mrb[0].mxu0
        %v1129 = vpop.f32.mrb[0].mxu0
        %v1130 = vpop.f32.mrb[0].mxu0
        %1131 = vdwg.mxu0
        %v1133 = vsel %vm806, %v1037, 0
        %v1136 = vsel %vm1042, %v804, 0
        %1138 = vmatprep.subr.bf16.mxu0 0
        %1139 = vmatpush1.bf16.msra.mxu0 %v1136
        %1140 = vmatprep.subr.bf16.mxu0 0
        %1141 = vmatpush1.bf16.msra.mxu0 0
        %1142 = vmatprep.subr.bf16.mxu0 0
        %1143 = vmatpush1.bf16.msra.mxu0 0
        %1144 = vmatprep.subr.bf16.mxu0 0
        %1145 = vmatpush1.bf16.msra.mxu0 0
        %1146 = vmatprep.subr.bf16.mxu0 0
        %1147 = vmatpush1.bf16.msra.mxu0 0
        %1148 = vmatprep.subr.bf16.mxu0 0
        %1149 = vmatpush1.bf16.msra.mxu0 0
        %1150 = vmatprep.subr.bf16.mxu0 0
        %1151 = vmatpush1.bf16.msra.mxu0 0
        %1152 = vmatprep.subr.bf16.mxu0 0
        %1153 = vmatpush1.bf16.msra.mxu0 0
        %1154 = vmatprep.subr.bf16.mxu0 0
        %1155 = vmatpush1.bf16.msra.mxu0 0
        %1156 = vmatprep.subr.bf16.mxu0 0
        %1157 = vmatpush1.bf16.msra.mxu0 0
        %1158 = vmatprep.subr.bf16.mxu0 0
        %1159 = vmatpush1.bf16.msra.mxu0 0
        %1160 = vmatprep.subr.bf16.mxu0 0
        %1161 = vmatpush1.bf16.msra.mxu0 0
        %1162 = vmatprep.subr.bf16.mxu0 0
        %1163 = vmatpush1.bf16.msra.mxu0 0
        %1164 = vmatprep.subr.bf16.mxu0 0
        %1165 = vmatpush1.bf16.msra.mxu0 0
        %1166 = vmatprep.subr.bf16.mxu0 0
        %1167 = vmatpush1.bf16.msra.mxu0 0
        %1168 = vmatprep.subr.bf16.mxu0 0
        %1169 = vmatpush1.bf16.msra.mxu0 0
        %1170 = vmatprep.mubr.bf16.mxu0 0
        %1171 = vmatmul.mubr.bf16.gmra.mrb[0].mxu0 %v1133
        %v1172 = vpop.f32.mrb[0].mxu0
        %v1173 = vadd.f32 0.0, %v1172
        %v1174 = vpop.f32.mrb[0].mxu0
        %v1175 = vpop.f32.mrb[0].mxu0
        %v1176 = vpop.f32.mrb[0].mxu0
        %1177 = vdwg.mxu0
        %v1179 = vsel %vm806, %v1038, 0
        %v1182 = vsel %vm1042, %v805, 0
        %1184 = vmatprep.subr.bf16.mxu0 0
        %1185 = vmatpush1.bf16.msra.mxu0 %v1182
        %1186 = vmatprep.subr.bf16.mxu0 0
        %1187 = vmatpush1.bf16.msra.mxu0 0
        %1188 = vmatprep.subr.bf16.mxu0 0
        %1189 = vmatpush1.bf16.msra.mxu0 0
        %1190 = vmatprep.subr.bf16.mxu0 0
        %1191 = vmatpush1.bf16.msra.mxu0 0
        %1192 = vmatprep.subr.bf16.mxu0 0
        %1193 = vmatpush1.bf16.msra.mxu0 0
        %1194 = vmatprep.subr.bf16.mxu0 0
        %1195 = vmatpush1.bf16.msra.mxu0 0
        %1196 = vmatprep.subr.bf16.mxu0 0
        %1197 = vmatpush1.bf16.msra.mxu0 0
        %1198 = vmatprep.subr.bf16.mxu0 0
        %1199 = vmatpush1.bf16.msra.mxu0 0
        %1200 = vmatprep.subr.bf16.mxu0 0
        %1201 = vmatpush1.bf16.msra.mxu0 0
        %1202 = vmatprep.subr.bf16.mxu0 0
        %1203 = vmatpush1.bf16.msra.mxu0 0
        %1204 = vmatprep.subr.bf16.mxu0 0
        %1205 = vmatpush1.bf16.msra.mxu0 0
        %1206 = vmatprep.subr.bf16.mxu0 0
        %1207 = vmatpush1.bf16.msra.mxu0 0
        %1208 = vmatprep.subr.bf16.mxu0 0
        %1209 = vmatpush1.bf16.msra.mxu0 0
        %1210 = vmatprep.subr.bf16.mxu0 0
        %1211 = vmatpush1.bf16.msra.mxu0 0
        %1212 = vmatprep.subr.bf16.mxu0 0
        %1213 = vmatpush1.bf16.msra.mxu0 0
        %1214 = vmatprep.subr.bf16.mxu0 0
        %1215 = vmatpush1.bf16.msra.mxu0 0
        %1216 = vmatprep.mubr.bf16.mxu0 0
        %1217 = vmatmul.mubr.bf16.gmra.mrb[0].mxu0 %v1179
        %v1218 = vpop.f32.mrb[0].mxu0
        %v1219 = vadd.f32 0.0, %v1218
        %v1220 = vpop.f32.mrb[0].mxu0
        %v1221 = vpop.f32.mrb[0].mxu0
        %v1222 = vpop.f32.mrb[0].mxu0
        %1223 = vdwg.mxu0
        %v1224 = vcombine.low %v1081, %v1173
        %v1225 = vcombine.high %v1081, %v1173
        %v1227 = vunpack.c.l.s4 1983009808
        %v1228 = vunpack.c.0.s8 %v1227
        %v1229 = vlaneseq
        %v1230 = vshrl.u32 %v1229, 7
        %v1231 = vsub.s32 %v1228, %v1230
        %v1232 = vrot.slane %v1224, %v1231
        %v1234 = vunpack.c.l.s4 1983009808
        %v1235 = vunpack.c.0.s8 %v1234
        %v1236 = vlaneseq
        %v1237 = vshrl.u32 %v1236, 7
        %v1238 = vsub.s32 %v1235, %v1237
        %v1239 = vrot.slane %v1225, %v1238
        %v1240 = vcombine.low %v1127, %v1219
        %v1241 = vcombine.high %v1127, %v1219
        %v1243 = vunpack.c.l.s4 1983009808
        %v1244 = vunpack.c.0.s8 %v1243
        %v1245 = vlaneseq
        %v1246 = vshrl.u32 %v1245, 7
        %v1247 = vsub.s32 %v1244, %v1246
        %v1248 = vrot.slane %v1240, %v1247
        %v1250 = vunpack.c.l.s4 1983009808
        %v1251 = vunpack.c.0.s8 %v1250
        %v1252 = vlaneseq
        %v1253 = vshrl.u32 %v1252, 7
        %v1254 = vsub.s32 %v1251, %v1253
        %v1255 = vrot.slane %v1241, %v1254
        %v1256 = vcombine.low %v1232, %v1248
        %v1257 = vcombine.high %v1232, %v1248
        %v1259 = vunpack.c.l.s4 1934713408
        %v1260 = vunpack.c.0.s8 %v1259
        %v1261 = vlaneseq
        %v1262 = vshrl.u32 %v1261, 7
        %v1263 = vsub.s32 %v1260, %v1262
        %v1264 = vrot.slane %v1256, %v1263
        %v1266 = vunpack.c.l.s4 1934713408
        %v1267 = vunpack.c.0.s8 %v1266
        %v1268 = vlaneseq
        %v1269 = vshrl.u32 %v1268, 7
        %v1270 = vsub.s32 %v1267, %v1269
        %v1271 = vrot.slane %v1257, %v1270
        %v1272 = vcombine.low %v1239, %v1255
        %v1273 = vcombine.high %v1239, %v1255
        %v1275 = vunpack.c.l.s4 1934713408
        %v1276 = vunpack.c.0.s8 %v1275
        %v1277 = vlaneseq
        %v1278 = vshrl.u32 %v1277, 7
        %v1279 = vsub.s32 %v1276, %v1278
        %v1280 = vrot.slane %v1272, %v1279
        %v1282 = vunpack.c.l.s4 1934713408
        %v1283 = vunpack.c.0.s8 %v1282
        %v1284 = vlaneseq
        %v1285 = vshrl.u32 %v1284, 7
        %v1286 = vsub.s32 %v1283, %v1285
        %v1287 = vrot.slane %v1273, %v1286
        %v1288 = vcombine.high %v1264, 0.0
        %v1289 = vcombine.high %v1271, 0.0
        %v1290 = vcombine.high %v1280, 0.0
        %v1291 = vcombine.high %v1287, 0.0
        %v1292 = vcombine.low %v1264, %v1271
        %v1294 = vunpack.c.l.s4 1983009808
        %v1295 = vunpack.c.0.s8 %v1294
        %v1296 = vlaneseq
        %v1297 = vshrl.u32 %v1296, 7
        %v1298 = vsub.s32 %v1295, %v1297
        %v1299 = vrot.slane %v1292, %v1298
        %v1300 = vcombine.low %v1288, %v1289
        %v1302 = vunpack.c.l.s4 1983009808
        %v1303 = vunpack.c.0.s8 %v1302
        %v1304 = vlaneseq
        %v1305 = vshrl.u32 %v1304, 7
        %v1306 = vsub.s32 %v1303, %v1305
        %v1307 = vrot.slane %v1300, %v1306
        %v1308 = vcombine.low %v1280, %v1287
        %v1310 = vunpack.c.l.s4 1983009808
        %v1311 = vunpack.c.0.s8 %v1310
        %v1312 = vlaneseq
        %v1313 = vshrl.u32 %v1312, 7
        %v1314 = vsub.s32 %v1311, %v1313
        %v1315 = vrot.slane %v1308, %v1314
        %v1316 = vcombine.low %v1290, %v1291
        %v1318 = vunpack.c.l.s4 1983009808
        %v1319 = vunpack.c.0.s8 %v1318
        %v1320 = vlaneseq
        %v1321 = vshrl.u32 %v1320, 7
        %v1322 = vsub.s32 %v1319, %v1321
        %v1323 = vrot.slane %v1316, %v1322
        %v1324 = vcombine.low %v1299, %v1307
        %v1325 = vcombine.high %v1299, %v1307
        %v1327 = vunpack.c.l.s4 1934713408
        %v1328 = vunpack.c.0.s8 %v1327
        %v1329 = vlaneseq
        %v1330 = vshrl.u32 %v1329, 7
        %v1331 = vsub.s32 %v1328, %v1330
        %v1332 = vrot.slane %v1324, %v1331
        %v1334 = vunpack.c.l.s4 1934713408
        %v1335 = vunpack.c.0.s8 %v1334
        %v1336 = vlaneseq
        %v1337 = vshrl.u32 %v1336, 7
        %v1338 = vsub.s32 %v1335, %v1337
        %v1339 = vrot.slane %v1325, %v1338
        %v1340 = vcombine.low %v1315, %v1323
        %v1341 = vcombine.high %v1315, %v1323
        %v1343 = vunpack.c.l.s4 1934713408
        %v1344 = vunpack.c.0.s8 %v1343
        %v1345 = vlaneseq
        %v1346 = vshrl.u32 %v1345, 7
        %v1347 = vsub.s32 %v1344, %v1346
        %v1348 = vrot.slane %v1340, %v1347
        %v1350 = vunpack.c.l.s4 1934713408
        %v1351 = vunpack.c.0.s8 %v1350
        %v1352 = vlaneseq
        %v1353 = vshrl.u32 %v1352, 7
        %v1354 = vsub.s32 %v1351, %v1353
        %v1355 = vrot.slane %v1341, %v1354
        %v1356 = vcombine.low %v1332, %v1348
        %v1357 = vcombine.high %v1332, %v1348
        %v1358 = vcombine.low %v1339, %v1355
        %v1359 = vcombine.high %v1339, %v1355
        %1361 = vrot.lane.b32.xlu0 %v1357, 8
        %v1362 = vpop.permute.xlu0 %1361
        %1365 = vrot.lane.b32.xlu0 %v1358, 16
        %v1366 = vpop.permute.xlu0 %1365
        %1369 = vrot.lane.b32.xlu0 %v1359, 24
        %v1370 = vpop.permute.xlu0 %1369
        %v1372 = vsel %vm806, %v1356, %v1362
        %vm1373 = vcmask 130048
        %v1374 = vsel %vm1373, %v1372, %v1366
        %vm1375 = vcmask 195584
        %v1376 = vsel %vm1375, %v1374, %v1370
        %v1377 = vpack.c.bf16 %v1376, %v1376
        %v1378 = vld [vmem:[#allocation7] sm:$0xf]
        %v1379 = vld [vmem:[#allocation7 + $0x4] sm:$0xf]
        %v1380 = vld [vmem:[#allocation7 + $0x8] sm:$0xf]
        %v1381 = vld [vmem:[#allocation7 + $0xc] sm:$0xf]
        %v1386 = vunpack.c.l.b16 %v1378
        %v1387 = vunpack.c.l.b16 %v1379
        %v1388 = vunpack.c.l.b16 %v1380
        %v1389 = vunpack.c.l.b16 %v1381
        %v1390 = vpack.c.b16 %v1387, %v1386
        %v1391 = vpack.c.b16 %v1389, %v1388
        %v1395 = vsel %vm308, %v1377, 0
        %1397 = vmatprep.subr.bf16.mxu0 0
        %1398 = vmatpush1.bf16.msra.mxu0 %v1390
        %1399 = vmatprep.subr.bf16.mxu0 0
        %1400 = vmatpush1.bf16.msra.mxu0 %v1391
        %1401 = vmatprep.subr.bf16.mxu0 0
        %1402 = vmatpush1.bf16.msra.mxu0 0
        %1403 = vmatprep.subr.bf16.mxu0 0
        %1404 = vmatpush1.bf16.msra.mxu0 0
        %1405 = vmatprep.subr.bf16.mxu0 0
        %1406 = vmatpush1.bf16.msra.mxu0 0
        %1407 = vmatprep.subr.bf16.mxu0 0
        %1408 = vmatpush1.bf16.msra.mxu0 0
        %1409 = vmatprep.subr.bf16.mxu0 0
        %1410 = vmatpush1.bf16.msra.mxu0 0
        %1411 = vmatprep.subr.bf16.mxu0 0
        %1412 = vmatpush1.bf16.msra.mxu0 0
        %1413 = vmatprep.subr.bf16.mxu0 0
        %1414 = vmatpush1.bf16.msra.mxu0 0
        %1415 = vmatprep.subr.bf16.mxu0 0
        %1416 = vmatpush1.bf16.msra.mxu0 0
        %1417 = vmatprep.subr.bf16.mxu0 0
        %1418 = vmatpush1.bf16.msra.mxu0 0
        %1419 = vmatprep.subr.bf16.mxu0 0
        %1420 = vmatpush1.bf16.msra.mxu0 0
        %1421 = vmatprep.subr.bf16.mxu0 0
        %1422 = vmatpush1.bf16.msra.mxu0 0
        %1423 = vmatprep.subr.bf16.mxu0 0
        %1424 = vmatpush1.bf16.msra.mxu0 0
        %1425 = vmatprep.subr.bf16.mxu0 0
        %1426 = vmatpush1.bf16.msra.mxu0 0
        %1427 = vmatprep.subr.bf16.mxu0 0
        %1428 = vmatpush1.bf16.msra.mxu0 0
        %1429 = vmatprep.mubr.bf16.mxu0 0
        %1430 = vmatmul.mubr.bf16.gmra.mrb[0].mxu0 %v1395
        %v1431 = vpop.f32.mrb[0].mxu0
        %v1432 = vadd.f32 0.0, %v1431
        %v1433 = vpop.f32.mrb[0].mxu0
        %v1434 = vpop.f32.mrb[0].mxu0
        %v1435 = vpop.f32.mrb[0].mxu0
        %1436 = vdwg.mxu0
        %v1437 = vlaneseq
        %v1438 = vshrl.u32 %v1437, 7
        %v1439 = vsub.s32 1, %v1438
        %v1440 = vrot.slane %v287, %v1439
        %v1441 = vadd.f32 %v1440, %v1432
        %v1442 = vsel %vm308, %v1441, 0.0
        %1443 = vadd.xlane.f32.xlu0 %v1442
        %v1444 = vpop.xlane.xlu0 %1443
        %v1445 = vrcp.pop 32.0
        %v1446 = vmul.f32 %v1444, %v1445
        %v1447 = vsub.f32 %v1441, %v1446
        %v1448 = vmul.f32 %v1447, %v1447
        %v1449 = vsel %vm308, %v1448, 0.0
        %1450 = vadd.xlane.f32.xlu0 %v1449
        %v1451 = vpop.xlane.xlu0 %1450
        %v1452 = vmul.f32 %v1451, %v1445
        %v1453 = vadd.f32 %v1452, 1e-05
        %v1454 = vrsqrt.pop %v1453
        %v1455 = vmul.f32 %v1447, %v1454
        %v1456 = vlaneseq
        %v1457 = vshrl.u32 %v1456, 7
        %v1458 = vsub.s32 2, %v1457
        %v1459 = vrot.slane %v287, %v1458
        %v1460 = vmul.f32 %v1455, %v1459
        %v1461 = vlaneseq
        %v1462 = vshrl.u32 %v1461, 7
        %v1463 = vsub.s32 3, %v1462
        %v1464 = vrot.slane %v287, %v1463
        %v1465 = vadd.f32 %v1460, %v1464
        %v1466 = vadd.f32 %v1465, %v285
        %v1467 = vpack.c.bf16 %v1466, %v1466
        %v1468 = vld [vmem:[#allocation8] sm:$0xf]
        %v1469 = vld [vmem:[#allocation8 + $0x4] sm:$0xf]
        %v1470 = vld [vmem:[#allocation8 + $0x8] sm:$0xf]
        %v1471 = vld [vmem:[#allocation8 + $0xc] sm:$0xf]
        %v1472 = vlaneseq
        %v1473 = vshrl.u32 %v1472, 7
        %v1474 = vsub.s32 4, %v1473
        %v1475 = vrot.slane %v287, %v1474
        %v1480 = vunpack.c.l.b16 %v1468
        %v1481 = vunpack.c.l.b16 %v1469
        %v1482 = vunpack.c.l.b16 %v1470
        %v1483 = vunpack.c.l.b16 %v1471
        %v1484 = vpack.c.b16 %v1481, %v1480
        %v1485 = vpack.c.b16 %v1483, %v1482
        %v1489 = vsel %vm308, %v1467, 0
        %1491 = vmatprep.subr.bf16.mxu0 0
        %1492 = vmatpush1.bf16.msra.mxu0 %v1484
        %1493 = vmatprep.subr.bf16.mxu0 0
        %1494 = vmatpush1.bf16.msra.mxu0 %v1485
        %1495 = vmatprep.subr.bf16.mxu0 0
        %1496 = vmatpush1.bf16.msra.mxu0 0
        %1497 = vmatprep.subr.bf16.mxu0 0
        %1498 = vmatpush1.bf16.msra.mxu0 0
        %1499 = vmatprep.subr.bf16.mxu0 0
        %1500 = vmatpush1.bf16.msra.mxu0 0
        %1501 = vmatprep.subr.bf16.mxu0 0
        %1502 = vmatpush1.bf16.msra.mxu0 0
        %1503 = vmatprep.subr.bf16.mxu0 0
        %1504 = vmatpush1.bf16.msra.mxu0 0
        %1505 = vmatprep.subr.bf16.mxu0 0
        %1506 = vmatpush1.bf16.msra.mxu0 0
        %1507 = vmatprep.subr.bf16.mxu0 0
        %1508 = vmatpush1.bf16.msra.mxu0 0
        %1509 = vmatprep.subr.bf16.mxu0 0
        %1510 = vmatpush1.bf16.msra.mxu0 0
        %1511 = vmatprep.subr.bf16.mxu0 0
        %1512 = vmatpush1.bf16.msra.mxu0 0
        %1513 = vmatprep.subr.bf16.mxu0 0
        %1514 = vmatpush1.bf16.msra.mxu0 0
        %1515 = vmatprep.subr.bf16.mxu0 0
        %1516 = vmatpush1.bf16.msra.mxu0 0
        %1517 = vmatprep.subr.bf16.mxu0 0
        %1518 = vmatpush1.bf16.msra.mxu0 0
        %1519 = vmatprep.subr.bf16.mxu0 0
        %1520 = vmatpush1.bf16.msra.mxu0 0
        %1521 = vmatprep.subr.bf16.mxu0 0
        %1522 = vmatpush1.bf16.msra.mxu0 0
        %1523 = vmatprep.mubr.bf16.mxu0 0
        %1524 = vmatmul.mubr.bf16.gmra.mrb[0].mxu0 %v1489
        %v1525 = vpop.f32.mrb[0].mxu0
        %v1526 = vadd.f32 %v1475, %v1525
        %v1527 = vpop.f32.mrb[0].mxu0
        %v1528 = vpop.f32.mrb[0].mxu0
        %v1529 = vpop.f32.mrb[0].mxu0
        %1530 = vdwg.mxu0
        %vm1531 = vcmp.ge.f32.partialorder %v1526, 0.0
        %v1532 = vmul.f32 %v1526, 0.01
        %v1533 = vsel %vm1531, %v1526, %v1532
        %v1534 = vsel %vm308, %v1533, 0.0
        %1535 = vadd.xlane.f32.xlu0 %v1534
        %v1536 = vpop.xlane.xlu0 %1535
        %v1537 = vmul.f32 %v1536, %v1445
        %v1538 = vsub.f32 %v1533, %v1537
        %v1539 = vmul.f32 %v1538, %v1538
        %v1540 = vsel %vm308, %v1539, 0.0
        %1541 = vadd.xlane.f32.xlu0 %v1540
        %v1542 = vpop.xlane.xlu0 %1541
        %v1543 = vmul.f32 %v1542, %v1445
        %v1544 = vadd.f32 %v1543, 1e-05
        %v1545 = vrsqrt.pop %v1544
        %v1546 = vmul.f32 %v1538, %v1545
        %v1547 = vlaneseq
        %v1548 = vshrl.u32 %v1547, 7
        %v1549 = vsub.s32 5, %v1548
        %v1550 = vrot.slane %v287, %v1549
        %v1551 = vmul.f32 %v1546, %v1550
        %v1552 = vlaneseq
        %v1553 = vshrl.u32 %v1552, 7
        %v1554 = vsub.s32 6, %v1553
        %v1555 = vrot.slane %v287, %v1554
        %v1556 = vadd.f32 %v1551, %v1555
        %v1557 = vadd.f32 %v1556, %v1466
        %1558 = vst.msk [vmem:[%s283] sm:$0xff] %vm308, %v1557
        %s1559 = sand.u32 %s142, 1
        %s1560 = scalar_lea.sflag [#allocation4], %s1559
        %s1561 = sand.u32 %s142, 1
        %s1562 = smul.addr %s1561, 8
        %s1563 = scalar_lea.vmem [#allocation10], %s1562
        // Predicated region
        $region57: #{tpu_custom_call.1} parent=39 // pred_check
          %p1564 = pneg %p152
        $region58: #{tpu_custom_call.1} parent=39 // pred_check_branch
          %1566 = sbr.rel (%p1564) target = $region60
        $region59: #{tpu_custom_call.1} parent=39 // pred_region
          %s1568 = ssub.s32 128, 128
          %1569 = vsyncadd %s1560, %s1568
          %s1570 = smul.addr %s24, 128
          %s1571 = scalar_lea.hbm %s5, %s1570
          %s1573 = sshll.u32 %s1563, 4
          %s1574 = int_to_ptr.vmem [resolvable:$true] %s1573
          %1576 = dma.vmem_to_hbm [thread:$0]  %s1574, 128, %s1571, %s1560
        $region60: #{tpu_custom_call.1} parent=39 // pred_fallthru
          _
      $region40: #{tpu_custom_call.1} parent=5 // pred_fallthru
        _
      %p1577 = scmp.le.s32.totalorder 2, %s19
      // Predicated region
      $region61: #{tpu_custom_call.1} parent=5 // pred_check
        %p1578 = pneg %p1577
      $region62: #{tpu_custom_call.1} parent=5 // pred_check_branch
        %1580 = sbr.rel (%p1578) target = $region64
      $region63: #{tpu_custom_call.1} parent=5 // pred_region
        %s1581 = ssub.s32 %s19, 2
        // Predicated region
        $region65: #{tpu_custom_call.1} parent=63 // pred_check
          %p1582 = pneg %p158
        $region66: #{tpu_custom_call.1} parent=63 // pred_check_branch
          %1584 = sbr.rel (%p1582) target = $region68
        $region67: #{tpu_custom_call.1} parent=63 // pred_region
          %s1585 = sand.u32 %s143, 1
          %s1586 = scalar_lea.sflag [#allocation4], %s1585
          %s1587 = sand.u32 %s143, 1
          %s1588 = smul.addr %s1587, 8
          %s1589 = scalar_lea.vmem [#allocation10], %s1588
          %1590 = dma.done %s1586, 128
        $region68: #{tpu_custom_call.1} parent=63 // pred_fallthru
          _
      $region64: #{tpu_custom_call.1} parent=5 // pred_fallthru
        _
    $region6: #{tpu_custom_call.1} parent=1 // loop_footer
      %s23 = sadd.s32 1, %s19
    $region7: #{tpu_custom_call.1} parent=1 // loop_footer_branch
      %18 = sbr.rel target = $region3
    $region8: #{tpu_custom_call.1} parent=1 // loop_exit
      _
    %1591 = vsyncpa [#allocation3], 1
    %s1592 = scalar_lea.sflag [#allocation3], 1
    %1593 = vsyncpa %s1592, 1
    %1594 = vsyncpa [#allocation6], 1
    %1595 = vsyncpa [#allocation9], 1
    %1596 = vsyncpa [#allocation4], 1
    %s1597 = scalar_lea.sflag [#allocation4], 1
    %1598 = vsyncpa %s1597, 1

</llo_original>
